<compile_context>
chip_gen: v7x
topology: tpu7x:2x2x1
jax: 0.10.0
libtpu: 0.0.40
codegen_flags: <defaults>
</compile_context>

<pallas_src>
import functools

import numpy as np

import jax
import jax.numpy as jnp
from jax.experimental import pallas as pl
from jax.experimental.pallas import tpu as pltpu


def _round_up(x, m):
    return (x + m - 1) // m * m


# ----------------------------- Pallas kernel ---------------------------------

def gin_layer_kernel(kstart_ref,           # scalar prefetch [I] (used by index_maps)
                     scale_ref, h_aug_ref, msg_ref, adj_ref,
                     w1_ref, s1_ref, t1_ref, w2_ref, s2_ref, t2_ref,
                     h_out_ref, acc_ref, *, apply_relu):
    """One fused GIN layer at grid point (row-tile i, reduction step k).

    grid = (I, KMAX): i tiles output node rows ('parallel'), k walks the
    data-dependent window of nonzero adjacency column tiles ('arbitrary',
    innermost), accumulating into acc_ref.

    scale_ref   [1, D]    (1 + eps), broadcast row
    h_aug_ref   [tm, D]   f32  h + vn[batch], row tile (precomputed)
    msg_ref     [tk, D]   bf16 relu(h + vn[batch]), reduction tile (precomputed)
    adj_ref     [tm, tk]  int8 dense adjacency block (adj[i, j] = #edges j->i)
    w1,s1,t1    [D,2D]bf16,[1,2D],[1,2D]  Lin(D,2D) + folded BN(2D) (bias folded)
    w2,s2,t2    [2D,D]bf16,[1,D], [1,D]   Lin(2D,D) + folded outer BN(D)
    h_out_ref   [tm, D]   layer output
    acc_ref     [tm, D]   f32 neighbour-aggregation accumulator (scratch)
    """
    del kstart_ref
    k = pl.program_id(1)
    nk = pl.num_programs(1)

    @pl.when(k == 0)
    def _():
        acc_ref[...] = jnp.zeros_like(acc_ref)

    # Neighbour aggregation: int8 adjacency upcast to bf16 right before the MXU.
    acc_ref[...] += jnp.dot(adj_ref[...].astype(jnp.bfloat16), msg_ref[...],
                            preferred_element_type=jnp.float32)

    # Epilogue once the neighbour reduction window is complete.
    @pl.when(k == nk - 1)
    def _():
        z = scale_ref[...] * h_aug_ref[...] + acc_ref[...]
        # conv MLP: Linear -> BN(eval, folded; bias folded) -> ReLU -> Linear
        z = jnp.dot(z.astype(jnp.bfloat16), w1_ref[...],
                    preferred_element_type=jnp.float32)
        z = jnp.maximum(z * s1_ref[...] + t1_ref[...], 0.0)
        z = jnp.dot(z.astype(jnp.bfloat16), w2_ref[...],
                    preferred_element_type=jnp.float32)
        # outer BatchNorm1d(D); ReLU on all but the last layer.
        z = z * s2_ref[...] + t2_ref[...]
        if apply_relu:
            z = jnp.maximum(z, 0.0)
        h_out_ref[...] = z


# ------------------------------ call wrapper ----------------------------------

def run_gin_layer(h_aug, msg, adj, scale, p, k_start, kmax, *, apply_relu, tm, tk):
    Np, D = h_aug.shape
    H = p["w1"].shape[1]
    I = Np // tm

    const = lambda i, k, ks: (0, 0)

    grid_spec = pltpu.PrefetchScalarGridSpec(
        num_scalar_prefetch=1,                       # k_start window table (SMEM)
        grid=(I, kmax),
        in_specs=[
            pl.BlockSpec((1, D), const),                              # (1 + eps)
            pl.BlockSpec((tm, D), lambda i, k, ks: (i, 0)),           # h_aug rows
            pl.BlockSpec((tk, D), lambda i, k, ks: (ks[i] + k, 0)),   # msg (bf16)
            pl.BlockSpec((tm, tk), lambda i, k, ks: (i, ks[i] + k)),  # adj (int8)
            pl.BlockSpec((D, H), const),                              # w1 (bf16)
            pl.BlockSpec((1, H), const),                              # s1
            pl.BlockSpec((1, H), const),                              # t1
            pl.BlockSpec((H, D), const),                              # w2 (bf16)
            pl.BlockSpec((1, D), const),                              # s2
            pl.BlockSpec((1, D), const),                              # t2
        ],
        out_specs=pl.BlockSpec((tm, D), lambda i, k, ks: (i, 0)),
        scratch_shapes=[pltpu.VMEM((tm, D), jnp.float32)],
    )

    # VMEM limit computed from the actual double-buffered block footprint
    # (leaves headroom on v7x's 64 MiB while staying generous on v5e/v6e).
    fp = (2 * (1 * D * 4 + tm * D * 4 + tk * D * 2 + tm * tk
               + D * H * 2 + H * D * 2 + 2 * H * 4 + 2 * D * 4 + tm * D * 4)
          + tm * D * 4)
    vmem_limit = int(min(48 << 20, max(16 << 20, 2 * fp)))

    cost = pl.CostEstimate(
        flops=2 * Np * (kmax * tk) * D + 4 * Np * D * H,
        transcendentals=0,
        bytes_accessed=(I * kmax * (tm * tk + tk * D * 2)
                        + 2 * Np * D * 4 + 2 * D * H * 2),
    )

    return pl.pallas_call(
        functools.partial(gin_layer_kernel, apply_relu=apply_relu),
        grid_spec=grid_spec,
        out_shape=jax.ShapeDtypeStruct((Np, D), jnp.float32),
        compiler_params=pltpu.CompilerParams(
            dimension_semantics=("parallel", "arbitrary"),
            vmem_limit_bytes=vmem_limit),
        cost_estimate=cost,
    )(k_start, scale, h_aug, msg, adj,
      p["w1"], p["s1"], p["t1"], p["w2"], p["s2"], p["t2"])


# --------------------------- parameter construction ---------------------------

def fold_bn(gamma, beta, mean, var, eps=1e-5):
    s = gamma / jnp.sqrt(var + eps)
    t = beta - mean * s
    return s[None, :], t[None, :]


def make_linear(key, fan_in, fan_out, scale=0.1):
    kw, kb = jax.random.split(key)
    w = jax.random.normal(kw, (fan_in, fan_out), jnp.float32) * scale
    b = jax.random.normal(kb, (1, fan_out), jnp.float32) * scale
    return w, b


def make_bn(key, dim):
    k1, k2, k3, k4 = jax.random.split(key, 4)
    gamma = jax.random.uniform(k1, (dim,), jnp.float32, 0.5, 1.5)
    beta = jax.random.normal(k2, (dim,), jnp.float32) * 0.1
    mean = jax.random.normal(k3, (dim,), jnp.float32) * 0.1
    var = jax.random.uniform(k4, (dim,), jnp.float32, 0.5, 1.5)
    return fold_bn(gamma, beta, mean, var)


def make_mlp_params(key, D):
    """Lin(D,2D)+BN(2D)+ReLU+Lin(2D,D)+BN(D): Linear biases folded into the BN
    shifts, weights stored bf16 (MXU operands)."""
    k1, k2, k3, k4 = jax.random.split(key, 4)
    w1, b1 = make_linear(k1, D, 2 * D)
    s1, t1 = make_bn(k2, 2 * D)
    w2, b2 = make_linear(k3, 2 * D, D)
    s2, t2 = make_bn(k4, D)
    return dict(w1=w1.astype(jnp.bfloat16), s1=s1, t1=b1 * s1 + t1,
                w2=w2.astype(jnp.bfloat16), s2=s2, t2=b2 * s2 + t2)


# ------------------------------ XLA glue helpers -------------------------------

def _mm_bf16(a, b):
    return jnp.dot(a.astype(jnp.bfloat16), b.astype(jnp.bfloat16),
                   preferred_element_type=jnp.float32)


def vn_mlp(z, q):
    """Virtual-node MLP (Lin+BN+ReLU+Lin+BN+ReLU, eval-mode folded BN).
    Tiny [G, D] matmuls -> plain XLA (a pallas_call here is pure launch overhead)."""
    z = jnp.maximum(_mm_bf16(z, q["w1"]) * q["s1"] + q["t1"], 0.0)
    z = jnp.maximum(_mm_bf16(z, q["w2"]) * q["s2"] + q["t2"], 0.0)
    return z


# ------------------------------ full forward -----------------------------------

def gin_node_virtualnode_forward(x_feat, edge_index, batch, params, num_layer):
    """Pallas-backed forward (eval mode, JK='last', residual=False, GINConv)."""
    N = x_feat.shape[0]
    # NOTE: assumes `batch` is sorted (PyG convention); forces one host sync.
    G = int(batch[-1]) + 1
    D = params["atom_emb"][0].shape[1]
    assert D % 128 == 0, "emb_dim must be a multiple of 128 (lane-dense)"

    # AtomEncoder: sum of per-feature embedding lookups (XLA glue).
    h = jnp.zeros((N, D), jnp.float32)
    for f, tbl in enumerate(params["atom_emb"]):
        h = h + jnp.take(tbl, x_feat[:, f], axis=0)

    # Tiling: tm fixed at 256 so the 'parallel' row grid keeps >= 2 steps
    # (v7x: 2 TensorCores); tk grows with N (capped 2048) so each reduction
    # step does enough MXU work to amortize per-grid-step pipeline overhead.
    tm = 256
    Np0 = _round_up(max(N, 2 * tm), tm)
    tk = min(2048, max(256, (Np0 // 2) // 128 * 128))
    Np = _round_up(Np0, tk)
    I, K = Np // tm, Np // tk

    # Dense adjacency, int8 HBM storage (adj[i, j] = #edges j->i; exact for
    # integer multiplicities <= 127), upcast to bf16 inside the kernel.
    # Padded rows/columns stay zero so they never contribute.
    src, dst = edge_index[0], edge_index[1]
    counts = jnp.zeros((Np, Np), jnp.float32).at[dst, src].add(1.0)
    assert int(counts.max()) <= 127, "int8 adjacency needs edge multiplicity <= 127"
    adj = counts.astype(jnp.int8)

    # Block-diagonal skip: nodes are sorted by graph, so for each row tile only
    # a contiguous window of column tiles can be nonzero. Derive the window
    # from the actual adjacency (correct for any edge structure) and prefetch
    # the per-row-tile window start so zero tiles are never DMA'd or multiplied.
    tile_nz = np.asarray((counts.reshape(I, tm, K, tk) != 0).any(axis=(1, 3)))
    k_start_np = np.zeros((I,), np.int32)
    k_count_np = np.ones((I,), np.int32)
    for i in range(I):
        nz = np.flatnonzero(tile_nz[i])
        if nz.size:
            k_start_np[i] = nz[0]
            k_count_np[i] = nz[-1] - nz[0] + 1
    kmax = int(k_count_np.max())
    k_start = jnp.asarray(np.minimum(k_start_np, K - kmax).astype(np.int32))

    # virtualnode_embedding is zero-initialized in the module.
    vn = jnp.zeros((G, D), jnp.float32)

    for layer in range(num_layer):
        is_last = layer == num_layer - 1
        # Hoisted out of the kernel (perf review): exact f32 vn gather, GIN
        # message prep (relu + bf16 cast halves the reduction-stream bytes)
        # and the global_add_pool segment-sum.
        h_aug = h + jnp.take(vn, batch, axis=0)                 # [N, D] f32
        msg = jnp.maximum(h_aug, 0.0).astype(jnp.bfloat16)      # relu(x_j), bf16
        h_aug_p = jnp.pad(h_aug, ((0, Np - N), (0, 0)))
        msg_p = jnp.pad(msg, ((0, Np - N), (0, 0)))

        h_p = run_gin_layer(h_aug_p, msg_p, adj, params["scale"][layer],
                            params["convs"][layer], k_start, kmax,
                            apply_relu=not is_last, tm=tm, tk=tk)
        h = h_p[:N]

        if not is_last:
            pooled = jnp.zeros((G, D), jnp.float32).at[batch].add(h_aug)
            vn = vn_mlp(pooled + vn, params["vn_mlps"][layer])
    return h                                                    # JK='last'


# ---------------------------- pure-JAX reference --------------------------------

def reference_forward(x_feat, edge_index, batch, params, num_layer):
    """Pure-JAX mirror of the PyTorch eval-mode forward with the same folded-BN
    and bf16-MXU-operand numerics as the kernel path."""
    N = x_feat.shape[0]
    G = int(batch[-1]) + 1
    D = params["atom_emb"][0].shape[1]
    h = jnp.zeros((N, D), jnp.float32)
    for f, tbl in enumerate(params["atom_emb"]):
        h = h + jnp.take(tbl, x_feat[:, f], axis=0)
    src, dst = edge_index[0], edge_index[1]
    adj = jnp.zeros((N, N), jnp.float32).at[dst, src].add(1.0).astype(jnp.bfloat16)
    vn = jnp.zeros((G, D), jnp.float32)

    for layer in range(num_layer):
        p = params["convs"][layer]
        h_aug = h + jnp.take(vn, batch, axis=0)
        msg = jnp.maximum(h_aug, 0.0).astype(jnp.bfloat16)
        agg = jnp.dot(adj, msg, preferred_element_type=jnp.float32)
        z = params["scale"][layer] * h_aug + agg
        z = jnp.maximum(_mm_bf16(z, p["w1"]) * p["s1"] + p["t1"], 0.0)
        z = _mm_bf16(z, p["w2"]) * p["s2"] + p["t2"]
        if layer != num_layer - 1:
            z = jnp.maximum(z, 0.0)
            pooled = jnp.zeros((G, D), jnp.float32).at[batch].add(h_aug)
            vn = vn_mlp(pooled + vn, params["vn_mlps"][layer])
        h = z
    return h


# ------------------------------------ main --------------------------------------

if __name__ == "__main__":
    key = jax.random.PRNGKey(0)

    NUM_LAYER = 3
    EMB_DIM = 128          # lane-dense feature axis (multiple of 128)
    N_NODES = 300          # pads to 512 -> 2 'parallel' row tiles, 2 k tiles
    N_EDGES = 1200
    N_GRAPHS = 4
    ATOM_VOCABS = [10, 5, 7]

    keys = jax.random.split(key, 9)

    x_feat = jnp.stack(
        [jax.random.randint(k, (N_NODES,), 0, v, jnp.int32)
         for k, v in zip(jax.random.split(keys[0], len(ATOM_VOCABS)),
                         ATOM_VOCABS)], axis=1)                        # [N, F]

    # Sorted graph-id vector (PyG batching convention).
    batch = jnp.sort(jax.random.randint(keys[2], (N_NODES,), 0, N_GRAPHS,
                                        jnp.int32))
    batch = batch.at[-1].set(N_GRAPHS - 1)       # ensure G graphs are present

    # Edges stay inside their graph (as in PyG batched data) -> block-diagonal adj.
    batch_np = np.asarray(batch)
    starts = np.searchsorted(batch_np, np.arange(N_GRAPHS), side="left")
    sizes = np.maximum(
        np.searchsorted(batch_np, np.arange(N_GRAPHS), side="right") - starts, 1)
    src = jax.random.randint(keys[1], (N_EDGES,), 0, N_NODES, jnp.int32)
    g_src = batch[src]
    off = jax.random.randint(keys[6], (N_EDGES,), 0, 1 << 30, jnp.int32)
    dst = (jnp.asarray(starts, jnp.int32)[g_src]
           + off % jnp.asarray(sizes, jnp.int32)[g_src])
    edge_index = jnp.stack([src, dst.astype(jnp.int32)])               # [2, E]

    atom_emb = [jax.random.normal(k, (v, EMB_DIM), jnp.float32) * 0.1
                for k, v in zip(jax.random.split(keys[3], len(ATOM_VOCABS)),
                                ATOM_VOCABS)]
    conv_keys = jax.random.split(keys[4], NUM_LAYER)
    vn_keys = jax.random.split(keys[5], NUM_LAYER - 1)
    params = dict(
        atom_emb=atom_emb,
        convs=[make_mlp_params(k, EMB_DIM) for k in conv_keys],
        vn_mlps=[make_mlp_params(k, EMB_DIM) for k in vn_keys],
        # GINConv.eps is initialized to 0 -> (1 + eps) = 1, stored as a [1, D]
        # broadcast row for a lane-friendly in-kernel multiply.
        scale=[jnp.ones((1, EMB_DIM), jnp.float32) for _ in range(NUM_LAYER)],
    )

    out = gin_node_virtualnode_forward(x_feat, edge_index, batch, params,
                                       NUM_LAYER)
    out = jax.block_until_ready(out)

    ref = reference_forward(x_feat, edge_index, batch, params, NUM_LAYER)
    ref = jax.block_until_ready(ref)

    assert out.shape == (N_NODES, EMB_DIM)
    # Kernel and reference share the exact f32 gather/pooling and identical
    # bf16-operand / f32-accumulate matmul numerics; residual differences stem
    # only from f32 accumulation order across the tiled reduction.
    assert jnp.allclose(out, ref, atol=1e-2, rtol=1e-2), "mismatch vs reference"

    print("KERNEL_OK")
</pallas_src>

<mosaic_0001>
module attributes {stable_mosaic.version = 11 : i64} {
  func.func @gin_layer_kernel(%arg0: i32, %arg1: i32, %arg2: memref<2xi32, #tpu.memory_space<smem>>, %arg3: memref<1x128xf32, #tpu.memory_space<vmem>>, %arg4: memref<256x128xf32, #tpu.memory_space<vmem>>, %arg5: memref<256x128xbf16, #tpu.memory_space<vmem>>, %arg6: memref<256x256xi8, #tpu.memory_space<vmem>>, %arg7: memref<128x256xbf16, #tpu.memory_space<vmem>>, %arg8: memref<1x256xf32, #tpu.memory_space<vmem>>, %arg9: memref<1x256xf32, #tpu.memory_space<vmem>>, %arg10: memref<256x128xbf16, #tpu.memory_space<vmem>>, %arg11: memref<1x128xf32, #tpu.memory_space<vmem>>, %arg12: memref<1x128xf32, #tpu.memory_space<vmem>>, %arg13: memref<256x128xf32, #tpu.memory_space<vmem>>, %arg14: memref<256x128xf32, #tpu.memory_space<vmem>>) attributes {dimension_semantics = [#tpu.dimension_semantics<parallel>, #tpu.dimension_semantics<arbitrary>], iteration_bounds = array<i64: 2, 2>, scalar_prefetch = 1 : i64, scratch_operands = 1 : i64, tpu.core_type = #tpu.core_type<tc>, window_params = [{pipeline_mode = #tpu.pipeline_mode<synchronous>, transform_indices = @transform_0, window_bounds = array<i64: 1, 128>}, {transform_indices = @transform_1, window_bounds = array<i64: 256, 128>}, {transform_indices = @transform_2, window_bounds = array<i64: 256, 128>}, {transform_indices = @transform_3, window_bounds = array<i64: 256, 256>}, {pipeline_mode = #tpu.pipeline_mode<synchronous>, transform_indices = @transform_4, window_bounds = array<i64: 128, 256>}, {pipeline_mode = #tpu.pipeline_mode<synchronous>, transform_indices = @transform_5, window_bounds = array<i64: 1, 256>}, {pipeline_mode = #tpu.pipeline_mode<synchronous>, transform_indices = @transform_6, window_bounds = array<i64: 1, 256>}, {pipeline_mode = #tpu.pipeline_mode<synchronous>, transform_indices = @transform_7, window_bounds = array<i64: 256, 128>}, {pipeline_mode = #tpu.pipeline_mode<synchronous>, transform_indices = @transform_8, window_bounds = array<i64: 1, 128>}, {pipeline_mode = #tpu.pipeline_mode<synchronous>, transform_indices = @transform_9, window_bounds = array<i64: 1, 128>}, {transform_indices = @transform_10, window_bounds = array<i64: 256, 128>}]} {
    %c0_i32 = arith.constant 0 : i32
    %0 = arith.cmpi eq, %arg1, %c0_i32 : i32
    %1 = arith.extui %0 : i1 to i32
    %c0_i32_0 = arith.constant 0 : i32
    %2 = arith.cmpi ne, %1, %c0_i32_0 : i32
    scf.if %2 {
      %cst_9 = arith.constant 0.000000e+00 : f32
      %13 = vector.broadcast %cst_9 : f32 to vector<256x128xf32>
      %c0_10 = arith.constant 0 : index
      %c0_11 = arith.constant 0 : index
      %14 = vector.load %arg14[%c0_10, %c0_11] : memref<256x128xf32, #tpu.memory_space<vmem>>, vector<256x128xf32>
      tpu.vector_store %arg14[%c0_10, %c0_11], %13 {strides = array<i32>} : memref<256x128xf32, #tpu.memory_space<vmem>>, vector<256x128xf32>,
    } else {
    }
    %c0 = arith.constant 0 : index
    %c0_1 = arith.constant 0 : index
    %3 = vector.load %arg14[%c0, %c0_1] : memref<256x128xf32, #tpu.memory_space<vmem>>, vector<256x128xf32>
    %c0_2 = arith.constant 0 : index
    %c0_3 = arith.constant 0 : index
    %4 = vector.load %arg6[%c0_2, %c0_3] : memref<256x256xi8, #tpu.memory_space<vmem>>, vector<256x256xi8>
    %5 = arith.sitofp %4 : vector<256x256xi8> to vector<256x256xbf16>
    %c0_4 = arith.constant 0 : index
    %c0_5 = arith.constant 0 : index
    %6 = vector.load %arg5[%c0_4, %c0_5] : memref<256x128xbf16, #tpu.memory_space<vmem>>, vector<256x128xbf16>
    %cst = arith.constant dense<0.000000e+00> : vector<256x128xf32>
    %7 = tpu.matmul %5, %6, %cst {dimension_numbers = #tpu.dot_dimension_numbers<[1], [0], [0], [1], [0, 0, 1, 1], [], []>} : vector<256x256xbf16>, vector<256x128xbf16>, vector<256x128xf32> -> vector<256x128xf32>
    %8 = arith.addf %3, %7 : vector<256x128xf32>
    %c0_6 = arith.constant 0 : index
    %c0_7 = arith.constant 0 : index
    %9 = vector.load %arg14[%c0_6, %c0_7] : memref<256x128xf32, #tpu.memory_space<vmem>>, vector<256x128xf32>
    tpu.vector_store %arg14[%c0_6, %c0_7], %8 {strides = array<i32>} : memref<256x128xf32, #tpu.memory_space<vmem>>, vector<256x128xf32>,
    %c1_i32 = arith.constant 1 : i32
    %10 = arith.cmpi eq, %arg1, %c1_i32 : i32
    %11 = arith.extui %10 : i1 to i32
    %c0_i32_8 = arith.constant 0 : i32
    %12 = arith.cmpi ne, %11, %c0_i32_8 : i32
    scf.if %12 {
      %c0_9 = arith.constant 0 : index
      %c0_10 = arith.constant 0 : index
      %13 = vector.load %arg3[%c0_9, %c0_10] : memref<1x128xf32, #tpu.memory_space<vmem>>, vector<1x128xf32>
      %c0_11 = arith.constant 0 : index
      %c0_12 = arith.constant 0 : index
      %14 = vector.load %arg4[%c0_11, %c0_12] : memref<256x128xf32, #tpu.memory_space<vmem>>, vector<256x128xf32>
      %15 = vector.broadcast %13 : vector<1x128xf32> to vector<256x128xf32>
      %16 = arith.mulf %15, %14 : vector<256x128xf32>
      %c0_13 = arith.constant 0 : index
      %c0_14 = arith.constant 0 : index
      %17 = vector.load %arg14[%c0_13, %c0_14] : memref<256x128xf32, #tpu.memory_space<vmem>>, vector<256x128xf32>
      %18 = arith.addf %16, %17 : vector<256x128xf32>
      %19 = arith.truncf %18 : vector<256x128xf32> to vector<256x128xbf16>
      %c0_15 = arith.constant 0 : index
      %c0_16 = arith.constant 0 : index
      %20 = vector.load %arg7[%c0_15, %c0_16] : memref<128x256xbf16, #tpu.memory_space<vmem>>, vector<128x256xbf16>
      %cst_17 = arith.constant dense<0.000000e+00> : vector<256x256xf32>
      %21 = tpu.matmul %19, %20, %cst_17 {dimension_numbers = #tpu.dot_dimension_numbers<[1], [0], [0], [1], [0, 0, 1, 1], [], []>} : vector<256x128xbf16>, vector<128x256xbf16>, vector<256x256xf32> -> vector<256x256xf32>
      %c0_18 = arith.constant 0 : index
      %c0_19 = arith.constant 0 : index
      %22 = vector.load %arg8[%c0_18, %c0_19] : memref<1x256xf32, #tpu.memory_space<vmem>>, vector<1x256xf32>
      %23 = vector.broadcast %22 : vector<1x256xf32> to vector<256x256xf32>
      %24 = arith.mulf %21, %23 : vector<256x256xf32>
      %c0_20 = arith.constant 0 : index
      %c0_21 = arith.constant 0 : index
      %25 = vector.load %arg9[%c0_20, %c0_21] : memref<1x256xf32, #tpu.memory_space<vmem>>, vector<1x256xf32>
      %26 = vector.broadcast %25 : vector<1x256xf32> to vector<256x256xf32>
      %27 = arith.addf %24, %26 : vector<256x256xf32>
      %cst_22 = arith.constant 0.000000e+00 : f32
      %28 = vector.broadcast %cst_22 : f32 to vector<256x256xf32>
      %29 = arith.maximumf %27, %28 : vector<256x256xf32>
      %30 = arith.truncf %29 : vector<256x256xf32> to vector<256x256xbf16>
      %c0_23 = arith.constant 0 : index
      %c0_24 = arith.constant 0 : index
      %31 = vector.load %arg10[%c0_23, %c0_24] : memref<256x128xbf16, #tpu.memory_space<vmem>>, vector<256x128xbf16>
      %cst_25 = arith.constant dense<0.000000e+00> : vector<256x128xf32>
      %32 = tpu.matmul %30, %31, %cst_25 {dimension_numbers = #tpu.dot_dimension_numbers<[1], [0], [0], [1], [0, 0, 1, 1], [], []>} : vector<256x256xbf16>, vector<256x128xbf16>, vector<256x128xf32> -> vector<256x128xf32>
      %c0_26 = arith.constant 0 : index
      %c0_27 = arith.constant 0 : index
      %33 = vector.load %arg11[%c0_26, %c0_27] : memref<1x128xf32, #tpu.memory_space<vmem>>, vector<1x128xf32>
      %34 = vector.broadcast %33 : vector<1x128xf32> to vector<256x128xf32>
      %35 = arith.mulf %32, %34 : vector<256x128xf32>
      %c0_28 = arith.constant 0 : index
      %c0_29 = arith.constant 0 : index
      %36 = vector.load %arg12[%c0_28, %c0_29] : memref<1x128xf32, #tpu.memory_space<vmem>>, vector<1x128xf32>
      %37 = vector.broadcast %36 : vector<1x128xf32> to vector<256x128xf32>
      %38 = arith.addf %35, %37 : vector<256x128xf32>
      %cst_30 = arith.constant 0.000000e+00 : f32
      %39 = vector.broadcast %cst_30 : f32 to vector<256x128xf32>
      %40 = arith.maximumf %38, %39 : vector<256x128xf32>
      %c0_31 = arith.constant 0 : index
      %c0_32 = arith.constant 0 : index
      %41 = vector.load %arg13[%c0_31, %c0_32] : memref<256x128xf32, #tpu.memory_space<vmem>>, vector<256x128xf32>
      tpu.vector_store %arg13[%c0_31, %c0_32], %40 {strides = array<i32>} : memref<256x128xf32, #tpu.memory_space<vmem>>, vector<256x128xf32>,
    } else {
    }
    return
  }
  func.func @transform_0(%arg0: i32, %arg1: i32, %arg2: memref<2xi32, #tpu.memory_space<smem>>) -> (i32, i32) {
    %c0_i32 = arith.constant 0 : i32
    %c0_i32_0 = arith.constant 0 : i32
    %c0_i32_1 = arith.constant 0 : i32
    return %c0_i32, %c0_i32_0 : i32, i32
  }
  func.func @transform_1(%arg0: i32, %arg1: i32, %arg2: memref<2xi32, #tpu.memory_space<smem>>) -> (i32, i32) {
    %c0_i32 = arith.constant 0 : i32
    %c0_i32_0 = arith.constant 0 : i32
    return %arg0, %c0_i32 : i32, i32
  }
  func.func @transform_2(%arg0: i32, %arg1: i32, %arg2: memref<2xi32, #tpu.memory_space<smem>>) -> (i32, i32) {
    %0 = arith.index_cast %arg0 : i32 to index
    %1 = memref.load %arg2[%0] : memref<2xi32, #tpu.memory_space<smem>>
    %2 = arith.addi %1, %arg1 : i32
    %c0_i32 = arith.constant 0 : i32
    %c0_i32_0 = arith.constant 0 : i32
    return %2, %c0_i32 : i32, i32
  }
  func.func @transform_3(%arg0: i32, %arg1: i32, %arg2: memref<2xi32, #tpu.memory_space<smem>>) -> (i32, i32) {
    %0 = arith.index_cast %arg0 : i32 to index
    %1 = memref.load %arg2[%0] : memref<2xi32, #tpu.memory_space<smem>>
    %2 = arith.addi %1, %arg1 : i32
    %c0_i32 = arith.constant 0 : i32
    return %arg0, %2 : i32, i32
  }
  func.func @transform_4(%arg0: i32, %arg1: i32, %arg2: memref<2xi32, #tpu.memory_space<smem>>) -> (i32, i32) {
    %c0_i32 = arith.constant 0 : i32
    %c0_i32_0 = arith.constant 0 : i32
    %c0_i32_1 = arith.constant 0 : i32
    return %c0_i32, %c0_i32_0 : i32, i32
  }
  func.func @transform_5(%arg0: i32, %arg1: i32, %arg2: memref<2xi32, #tpu.memory_space<smem>>) -> (i32, i32) {
    %c0_i32 = arith.constant 0 : i32
    %c0_i32_0 = arith.constant 0 : i32
    %c0_i32_1 = arith.constant 0 : i32
    return %c0_i32, %c0_i32_0 : i32, i32
  }
  func.func @transform_6(%arg0: i32, %arg1: i32, %arg2: memref<2xi32, #tpu.memory_space<smem>>) -> (i32, i32) {
    %c0_i32 = arith.constant 0 : i32
    %c0_i32_0 = arith.constant 0 : i32
    %c0_i32_1 = arith.constant 0 : i32
    return %c0_i32, %c0_i32_0 : i32, i32
  }
  func.func @transform_7(%arg0: i32, %arg1: i32, %arg2: memref<2xi32, #tpu.memory_space<smem>>) -> (i32, i32) {
    %c0_i32 = arith.constant 0 : i32
    %c0_i32_0 = arith.constant 0 : i32
    %c0_i32_1 = arith.constant 0 : i32
    return %c0_i32, %c0_i32_0 : i32, i32
  }
  func.func @transform_8(%arg0: i32, %arg1: i32, %arg2: memref<2xi32, #tpu.memory_space<smem>>) -> (i32, i32) {
    %c0_i32 = arith.constant 0 : i32
    %c0_i32_0 = arith.constant 0 : i32
    %c0_i32_1 = arith.constant 0 : i32
    return %c0_i32, %c0_i32_0 : i32, i32
  }
  func.func @transform_9(%arg0: i32, %arg1: i32, %arg2: memref<2xi32, #tpu.memory_space<smem>>) -> (i32, i32) {
    %c0_i32 = arith.constant 0 : i32
    %c0_i32_0 = arith.constant 0 : i32
    %c0_i32_1 = arith.constant 0 : i32
    return %c0_i32, %c0_i32_0 : i32, i32
  }
  func.func @transform_10(%arg0: i32, %arg1: i32, %arg2: memref<2xi32, #tpu.memory_space<smem>>) -> (i32, i32) {
    %c0_i32 = arith.constant 0 : i32
    %c0_i32_0 = arith.constant 0 : i32
    return %arg0, %c0_i32 : i32, i32
  }
}

</mosaic_0001>

<llo_original>
// kernel: tpu_custom_call.1
$region0: #{tpu_custom_call.1}
  #allocation0 [shape = 'u32[]', space=smem, size = 0x4, offset = 0x4, fixed_abs, tag = 'smem constant byte address 0x4 - core index']
  #allocation1 [shape = 'u32[144,128]{1,0:T(1,128)}', space=vmem, size = 0x12000, scoped, tag = 'internal scratch']
  #allocation2 [shape = 'f32[256,128]{1,0:T(8,128)}', space=vmem, size = 0x20000, scoped, tag = 'scratch operand']
  #allocation3 [shape = 's32[1]{0}', space=sflag, size = 0x4, scoped, tag = 'scoped memory for tpu_custom_call.1']
  #allocation4 [shape = 'u8[512]{0}', space=smem, size = 0x200, scoped, tag = 'prefetched SMEM operand 0']
  %s0 = inlined_call_operand.hbm [shape: s32[2], index: 0, kind: input, shape index: {}]
  %s1 = inlined_call_operand.vmem [shape: f32[1,128], index: 1, kind: input, shape index: {}]
  %s2 = inlined_call_operand.hbm [shape: f32[512,128], index: 2, kind: input, shape index: {}]
  %s3 = inlined_call_operand.hbm [shape: bf16[512,128], index: 3, kind: input, shape index: {}]
  %s4 = inlined_call_operand.hbm [shape: s8[512,512], index: 4, kind: input, shape index: {}]
  %s5 = inlined_call_operand.hbm [shape: bf16[128,256], index: 5, kind: input, shape index: {}]
  %s6 = inlined_call_operand.vmem [shape: f32[1,256], index: 6, kind: input, shape index: {}]
  %s7 = inlined_call_operand.vmem [shape: f32[1,256], index: 7, kind: input, shape index: {}]
  %s8 = inlined_call_operand.hbm [shape: bf16[256,128], index: 8, kind: input, shape index: {}]
  %s9 = inlined_call_operand.vmem [shape: f32[1,128], index: 9, kind: input, shape index: {}]
  %s10 = inlined_call_operand.vmem [shape: f32[1,128], index: 10, kind: input, shape index: {}]
  %s11 = inlined_call_operand.hbm [shape: f32[512,128], index: 11, kind: output, shape index: {}]
  %s12 = sld [smem:[#allocation0]]
  $region101: #{tpu_custom_call.1} parent=0
    _
  %s14 = ssub.s32 1, %s12
  %s15 = scalar_select 0, %s14, %s12
  %17 = dma.hbm_to_smem %s0, 16, [#allocation4], [#allocation3]
  %18 = dma.done [#allocation3], 16
  %19 = sfence
  $region1: #{tpu_custom_call.1} parent=0
    #allocation5 [shape = 'u8[262144]{0}', space=vmem, size = 0x40000, scoped, tag = 'input window, operand 2']
    #allocation6 [shape = 's32[2]{0}', space=sflag, size = 0x8, scoped, tag = 'scoped memory for tpu_custom_call.1']
    #allocation7 [shape = 's32[2]{0}', space=sflag, size = 0x8, scoped, tag = 'scoped memory for tpu_custom_call.1']
    #allocation8 [shape = 'u8[131072]{0}', space=vmem, size = 0x20000, scoped, tag = 'input window, operand 3']
    #allocation9 [shape = 's32[2]{0}', space=sflag, size = 0x8, scoped, tag = 'scoped memory for tpu_custom_call.1']
    #allocation10 [shape = 'u8[131072]{0}', space=vmem, size = 0x20000, scoped, tag = 'input window, operand 4']
    #allocation11 [shape = 'u8[65536]{0}', space=vmem, size = 0x10000, scoped, tag = 'input window, operand 5, single buffered']
    #allocation12 [shape = 's32[1]{0}', space=sflag, size = 0x4, scoped, tag = 'scoped memory for tpu_custom_call.1']
    #allocation13 [shape = 'u8[65536]{0}', space=vmem, size = 0x10000, scoped, tag = 'input window, operand 8, single buffered']
    #allocation14 [shape = 'u8[262144]{0}', space=vmem, size = 0x40000, scoped, tag = 'output window, operand 0']
    %20 = vsyncpa [#allocation6], 0
    %s21 = scalar_lea.sflag [#allocation6], 1
    %22 = vsyncpa %s21, 0
    %23 = vsyncpa [#allocation9], 0
    %s24 = scalar_lea.sflag [#allocation9], 1
    %25 = vsyncpa %s24, 0
    %26 = vsyncpa [#allocation12], 0
    %27 = vsyncpa [#allocation7], 0
    %s28 = scalar_lea.sflag [#allocation7], 1
    %29 = vsyncpa %s28, 0
    loop: start=0, step=1, limit=6
    $region2: #{tpu_custom_call.1} parent=1 // loop_pre_header
      _
    $region3: #{tpu_custom_call.1} parent=1 // loop_header
      %s31 = sphi 0, %s35
      %p32 = scmp.ge.s32.totalorder %s31, 6
      %s38 = sphi 0, %s50
      %s39 = sphi 0, %s46
      %s40 = sphi 0, %s38
      %s41 = sphi 0, %s39
      %s42 = sphi 0, %s40
      %s43 = sphi 0, %s41
      %s51 = sphi 0, %s51
      %s53 = sphi 0, %s51
      %s54 = sphi 0, %s53
      %s68 = sphi 0, %s54
      %s74 = sphi 0, %s76
      %s77 = sphi 0, %s74
      %s78 = sphi 0, %s77
      %s94 = sphi 0, %s78
      %s104 = sphi 0, %s106
      %s107 = sphi 0, %s104
      %s108 = sphi 0, %s107
      %s124 = sphi 0, %s108
      %s136 = sphi 0, %s138
      %s139 = sphi 0, %s136
      %s140 = sphi 0, %s139
      %s156 = sphi 0, %s140
      %s160 = sphi 0, %s160
      %s162 = sphi 0, %s160
      %s163 = sphi 0, %s162
      %s177 = sphi 0, %s163
      %s181 = sphi 0, %s181
      %s183 = sphi 0, %s181
      %s184 = sphi 0, %s183
      %s198 = sphi 0, %s184
      %s202 = sphi 0, %s202
      %s204 = sphi 0, %s202
      %s205 = sphi 0, %s204
      %s219 = sphi 0, %s205
      %s223 = sphi 0, %s223
      %s225 = sphi 0, %s223
      %s226 = sphi 0, %s225
      %s240 = sphi 0, %s226
      %s244 = sphi 0, %s244
      %s246 = sphi 0, %s244
      %s247 = sphi 0, %s246
      %s261 = sphi 0, %s247
      %s265 = sphi 0, %s265
      %s267 = sphi 0, %s265
      %s268 = sphi 0, %s267
      %s282 = sphi 0, %s268
      %s288 = sphi 0, %s290
      %s291 = sphi 0, %s288
      %s292 = sphi 0, %s291
      %s308 = sphi 0, %s292
    $region4: #{tpu_custom_call.1} parent=1 // loop_header_branch
      %34 = sbr.rel (%p32) target = $region8
    $region5: #{tpu_custom_call.1} parent=1 // loop_body
      %s36 = ssub.s32 %s31, 1
      %s37 = ssub.s32 %s31, 2
      %s44 = sadd.s32 1, %s39
      %p45 = scmp.ge.s32.totalorder %s44, 2
      %s46 = scalar_select %p45, 0, %s44
      %s47 = sadd.s32 1, %s38
      %s48 = scalar_select %p45, %s47, %s38
      %p49 = scmp.ge.s32.totalorder %s48, 2
      %s50 = scalar_select %p49, 0, %s48
      %s52 = sadd.s32 %s51, 1
      %p55 = scmp.eq.s32.totalorder %s31, 3
      %p56 = scmp.ne.s32.totalorder %s51, %s53
      %p57 = scmp.eq.s32.totalorder %s31, 0
      %p58 = por %p56, %p57
      %p59 = scmp.ne.s32.totalorder %s51, %s53
      %p60 = scmp.eq.s32.totalorder %s36, 3
      %p61 = por %p59, %p60
      %p62 = scmp.ne.s32.totalorder %s53, %s54
      %p63 = scmp.eq.s32.totalorder %s36, 0
      %p64 = por %p62, %p63
      %p65 = scmp.ne.s32.totalorder %s53, %s54
      %p66 = scmp.eq.s32.totalorder %s37, 3
      %p67 = por %p65, %p66
      %p69 = scmp.ne.s32.totalorder %s54, %s68
      %p70 = scmp.eq.s32.totalorder %s37, 0
      %p71 = por %p69, %p70
      %s72 = ssub.s32 %s38, %s50
      %p73 = scmp.eq.s32.totalorder %s72, 0
      %s75 = sadd.s32 %s74, 1
      %s76 = scalar_select %p73, %s74, %s75
      %p79 = pneg %p73
      %p80 = scmp.eq.s32.totalorder %s31, 3
      %p81 = por %p79, %p80
      %p82 = scmp.ne.s32.totalorder %s74, %s77
      %p83 = scmp.eq.s32.totalorder %s31, 0
      %p84 = por %p82, %p83
      %p85 = scmp.ne.s32.totalorder %s74, %s77
      %p86 = scmp.eq.s32.totalorder %s36, 3
      %p87 = por %p85, %p86
      %p88 = scmp.ne.s32.totalorder %s77, %s78
      %p89 = scmp.eq.s32.totalorder %s36, 0
      %p90 = por %p88, %p89
      %p91 = scmp.ne.s32.totalorder %s77, %s78
      %p92 = scmp.eq.s32.totalorder %s37, 3
      %p93 = por %p91, %p92
      %p95 = scmp.ne.s32.totalorder %s78, %s94
      %p96 = scmp.eq.s32.totalorder %s37, 0
      %p97 = por %p95, %p96
      %s98 = sld [smem:[#allocation4 + %s38]]
      %s99 = sadd.s32 %s98, %s39
      %s100 = sld [smem:[#allocation4 + %s50]]
      %s101 = sadd.s32 %s100, %s46
      %s102 = ssub.s32 %s99, %s101
      %p103 = scmp.eq.s32.totalorder %s102, 0
      %s105 = sadd.s32 %s104, 1
      %s106 = scalar_select %p103, %s104, %s105
      %p109 = pneg %p103
      %p110 = scmp.eq.s32.totalorder %s31, 3
      %p111 = por %p109, %p110
      %p112 = scmp.ne.s32.totalorder %s104, %s107
      %p113 = scmp.eq.s32.totalorder %s31, 0
      %p114 = por %p112, %p113
      %p115 = scmp.ne.s32.totalorder %s104, %s107
      %p116 = scmp.eq.s32.totalorder %s36, 3
      %p117 = por %p115, %p116
      %p118 = scmp.ne.s32.totalorder %s107, %s108
      %p119 = scmp.eq.s32.totalorder %s36, 0
      %p120 = por %p118, %p119
      %p121 = scmp.ne.s32.totalorder %s107, %s108
      %p122 = scmp.eq.s32.totalorder %s37, 3
      %p123 = por %p121, %p122
      %p125 = scmp.ne.s32.totalorder %s108, %s124
      %p126 = scmp.eq.s32.totalorder %s37, 0
      %p127 = por %p125, %p126
      %s128 = sld [smem:[#allocation4 + %s38]]
      %s129 = sadd.s32 %s128, %s39
      %s130 = sld [smem:[#allocation4 + %s50]]
      %s131 = sadd.s32 %s130, %s46
      %s132 = ssub.s32 %s38, %s50
      %s133 = ssub.s32 %s129, %s131
      %s134 = sor.u32 %s132, %s133
      %p135 = scmp.eq.s32.totalorder %s134, 0
      %s137 = sadd.s32 %s136, 1
      %s138 = scalar_select %p135, %s136, %s137
      %p141 = pneg %p135
      %p142 = scmp.eq.s32.totalorder %s31, 3
      %p143 = por %p141, %p142
      %p144 = scmp.ne.s32.totalorder %s136, %s139
      %p145 = scmp.eq.s32.totalorder %s31, 0
      %p146 = por %p144, %p145
      %p147 = scmp.ne.s32.totalorder %s136, %s139
      %p148 = scmp.eq.s32.totalorder %s36, 3
      %p149 = por %p147, %p148
      %p150 = scmp.ne.s32.totalorder %s139, %s140
      %p151 = scmp.eq.s32.totalorder %s36, 0
      %p152 = por %p150, %p151
      %p153 = scmp.ne.s32.totalorder %s139, %s140
      %p154 = scmp.eq.s32.totalorder %s37, 3
      %p155 = por %p153, %p154
      %p157 = scmp.ne.s32.totalorder %s140, %s156
      %p158 = scmp.eq.s32.totalorder %s37, 0
      %p159 = por %p157, %p158
      %s161 = sadd.s32 %s160, 1
      %p164 = scmp.eq.s32.totalorder %s31, 3
      %p165 = scmp.ne.s32.totalorder %s160, %s162
      %p166 = scmp.eq.s32.totalorder %s31, 0
      %p167 = por %p165, %p166
      %p168 = scmp.ne.s32.totalorder %s160, %s162
      %p169 = scmp.eq.s32.totalorder %s36, 3
      %p170 = por %p168, %p169
      %p171 = scmp.ne.s32.totalorder %s162, %s163
      %p172 = scmp.eq.s32.totalorder %s36, 0
      %p173 = por %p171, %p172
      %p174 = scmp.ne.s32.totalorder %s162, %s163
      %p175 = scmp.eq.s32.totalorder %s37, 3
      %p176 = por %p174, %p175
      %p178 = scmp.ne.s32.totalorder %s163, %s177
      %p179 = scmp.eq.s32.totalorder %s37, 0
      %p180 = por %p178, %p179
      %s182 = sadd.s32 %s181, 1
      %p185 = scmp.eq.s32.totalorder %s31, 3
      %p186 = scmp.ne.s32.totalorder %s181, %s183
      %p187 = scmp.eq.s32.totalorder %s31, 0
      %p188 = por %p186, %p187
      %p189 = scmp.ne.s32.totalorder %s181, %s183
      %p190 = scmp.eq.s32.totalorder %s36, 3
      %p191 = por %p189, %p190
      %p192 = scmp.ne.s32.totalorder %s183, %s184
      %p193 = scmp.eq.s32.totalorder %s36, 0
      %p194 = por %p192, %p193
      %p195 = scmp.ne.s32.totalorder %s183, %s184
      %p196 = scmp.eq.s32.totalorder %s37, 3
      %p197 = por %p195, %p196
      %p199 = scmp.ne.s32.totalorder %s184, %s198
      %p200 = scmp.eq.s32.totalorder %s37, 0
      %p201 = por %p199, %p200
      %s203 = sadd.s32 %s202, 1
      %p206 = scmp.eq.s32.totalorder %s31, 3
      %p207 = scmp.ne.s32.totalorder %s202, %s204
      %p208 = scmp.eq.s32.totalorder %s31, 0
      %p209 = por %p207, %p208
      %p210 = scmp.ne.s32.totalorder %s202, %s204
      %p211 = scmp.eq.s32.totalorder %s36, 3
      %p212 = por %p210, %p211
      %p213 = scmp.ne.s32.totalorder %s204, %s205
      %p214 = scmp.eq.s32.totalorder %s36, 0
      %p215 = por %p213, %p214
      %p216 = scmp.ne.s32.totalorder %s204, %s205
      %p217 = scmp.eq.s32.totalorder %s37, 3
      %p218 = por %p216, %p217
      %p220 = scmp.ne.s32.totalorder %s205, %s219
      %p221 = scmp.eq.s32.totalorder %s37, 0
      %p222 = por %p220, %p221
      %s224 = sadd.s32 %s223, 1
      %p227 = scmp.eq.s32.totalorder %s31, 3
      %p228 = scmp.ne.s32.totalorder %s223, %s225
      %p229 = scmp.eq.s32.totalorder %s31, 0
      %p230 = por %p228, %p229
      %p231 = scmp.ne.s32.totalorder %s223, %s225
      %p232 = scmp.eq.s32.totalorder %s36, 3
      %p233 = por %p231, %p232
      %p234 = scmp.ne.s32.totalorder %s225, %s226
      %p235 = scmp.eq.s32.totalorder %s36, 0
      %p236 = por %p234, %p235
      %p237 = scmp.ne.s32.totalorder %s225, %s226
      %p238 = scmp.eq.s32.totalorder %s37, 3
      %p239 = por %p237, %p238
      %p241 = scmp.ne.s32.totalorder %s226, %s240
      %p242 = scmp.eq.s32.totalorder %s37, 0
      %p243 = por %p241, %p242
      %s245 = sadd.s32 %s244, 1
      %p248 = scmp.eq.s32.totalorder %s31, 3
      %p249 = scmp.ne.s32.totalorder %s244, %s246
      %p250 = scmp.eq.s32.totalorder %s31, 0
      %p251 = por %p249, %p250
      %p252 = scmp.ne.s32.totalorder %s244, %s246
      %p253 = scmp.eq.s32.totalorder %s36, 3
      %p254 = por %p252, %p253
      %p255 = scmp.ne.s32.totalorder %s246, %s247
      %p256 = scmp.eq.s32.totalorder %s36, 0
      %p257 = por %p255, %p256
      %p258 = scmp.ne.s32.totalorder %s246, %s247
      %p259 = scmp.eq.s32.totalorder %s37, 3
      %p260 = por %p258, %p259
      %p262 = scmp.ne.s32.totalorder %s247, %s261
      %p263 = scmp.eq.s32.totalorder %s37, 0
      %p264 = por %p262, %p263
      %s266 = sadd.s32 %s265, 1
      %p269 = scmp.eq.s32.totalorder %s31, 3
      %p270 = scmp.ne.s32.totalorder %s265, %s267
      %p271 = scmp.eq.s32.totalorder %s31, 0
      %p272 = por %p270, %p271
      %p273 = scmp.ne.s32.totalorder %s265, %s267
      %p274 = scmp.eq.s32.totalorder %s36, 3
      %p275 = por %p273, %p274
      %p276 = scmp.ne.s32.totalorder %s267, %s268
      %p277 = scmp.eq.s32.totalorder %s36, 0
      %p278 = por %p276, %p277
      %p279 = scmp.ne.s32.totalorder %s267, %s268
      %p280 = scmp.eq.s32.totalorder %s37, 3
      %p281 = por %p279, %p280
      %p283 = scmp.ne.s32.totalorder %s268, %s282
      %p284 = scmp.eq.s32.totalorder %s37, 0
      %p285 = por %p283, %p284
      %s286 = ssub.s32 %s38, %s50
      %p287 = scmp.eq.s32.totalorder %s286, 0
      %s289 = sadd.s32 %s288, 1
      %s290 = scalar_select %p287, %s288, %s289
      %p293 = pneg %p287
      %p294 = scmp.eq.s32.totalorder %s31, 3
      %p295 = por %p293, %p294
      %p296 = scmp.ne.s32.totalorder %s288, %s291
      %p297 = scmp.eq.s32.totalorder %s31, 0
      %p298 = por %p296, %p297
      %p299 = scmp.ne.s32.totalorder %s288, %s291
      %p300 = scmp.eq.s32.totalorder %s36, 3
      %p301 = por %p299, %p300
      %p302 = scmp.ne.s32.totalorder %s291, %s292
      %p303 = scmp.eq.s32.totalorder %s36, 0
      %p304 = por %p302, %p303
      %p305 = scmp.ne.s32.totalorder %s291, %s292
      %p306 = scmp.eq.s32.totalorder %s37, 3
      %p307 = por %p305, %p306
      %p309 = scmp.ne.s32.totalorder %s292, %s308
      %p310 = scmp.eq.s32.totalorder %s37, 0
      %p311 = por %p309, %p310
      %p312 = scmp.le.s32.totalorder 1, %s31
      %p313 = scmp.lt.s32.totalorder %s31, 5
      %p314 = pnand %p312, %p313
      %p315 = pneg %p314
      // Predicated region
      $region9: #{tpu_custom_call.1} parent=5 // pred_check
        _
      $region10: #{tpu_custom_call.1} parent=5 // pred_check_branch
        %317 = sbr.rel (%p314) target = $region12
      $region11: #{tpu_custom_call.1} parent=5 // pred_region
        %s318 = ssub.s32 %s31, 1
        // Predicated region
        $region13: #{tpu_custom_call.1} parent=11 // pred_check
          %p319 = pneg %p64
        $region14: #{tpu_custom_call.1} parent=11 // pred_check_branch
          %321 = sbr.rel (%p319) target = $region16
        $region15: #{tpu_custom_call.1} parent=11 // pred_region
          _
        $region16: #{tpu_custom_call.1} parent=11 // pred_fallthru
          _
        // Predicated region
        $region17: #{tpu_custom_call.1} parent=11 // pred_check
          %p322 = pneg %p173
        $region18: #{tpu_custom_call.1} parent=11 // pred_check_branch
          %324 = sbr.rel (%p322) target = $region20
        $region19: #{tpu_custom_call.1} parent=11 // pred_region
          %s326 = ssub.s32 2048, 2048
          %327 = vsyncadd [#allocation12], %s326
          %s328 = sshll.u32 [#allocation11], 4
          %s329 = int_to_ptr.vmem [resolvable:$true] %s328
          %334 = dma.hbm_to_vmem [thread:$0]  %s5, 2048, %s329, [#allocation12], 128, 128, 8
        $region20: #{tpu_custom_call.1} parent=11 // pred_fallthru
          _
        // Predicated region
        $region21: #{tpu_custom_call.1} parent=11 // pred_check
          %p335 = pneg %p194
        $region22: #{tpu_custom_call.1} parent=11 // pred_check_branch
          %337 = sbr.rel (%p335) target = $region24
        $region23: #{tpu_custom_call.1} parent=11 // pred_region
          _
        $region24: #{tpu_custom_call.1} parent=11 // pred_fallthru
          _
        // Predicated region
        $region25: #{tpu_custom_call.1} parent=11 // pred_check
          %p338 = pneg %p215
        $region26: #{tpu_custom_call.1} parent=11 // pred_check_branch
          %340 = sbr.rel (%p338) target = $region28
        $region27: #{tpu_custom_call.1} parent=11 // pred_region
          _
        $region28: #{tpu_custom_call.1} parent=11 // pred_fallthru
          _
        // Predicated region
        $region29: #{tpu_custom_call.1} parent=11 // pred_check
          %p341 = pneg %p236
        $region30: #{tpu_custom_call.1} parent=11 // pred_check_branch
          %343 = sbr.rel (%p341) target = $region32
        $region31: #{tpu_custom_call.1} parent=11 // pred_region
          %s345 = ssub.s32 2048, 2048
          %346 = vsyncadd [#allocation12], %s345
          %s347 = sshll.u32 [#allocation13], 4
          %s348 = int_to_ptr.vmem [resolvable:$true] %s347
          %353 = dma.hbm_to_vmem [thread:$0]  %s8, 2048, %s348, [#allocation12], 64, 64, 4
        $region32: #{tpu_custom_call.1} parent=11 // pred_fallthru
          _
        // Predicated region
        $region33: #{tpu_custom_call.1} parent=11 // pred_check
          %p354 = pneg %p257
        $region34: #{tpu_custom_call.1} parent=11 // pred_check_branch
          %356 = sbr.rel (%p354) target = $region36
        $region35: #{tpu_custom_call.1} parent=11 // pred_region
          _
        $region36: #{tpu_custom_call.1} parent=11 // pred_fallthru
          _
        // Predicated region
        $region37: #{tpu_custom_call.1} parent=11 // pred_check
          %p357 = pneg %p278
        $region38: #{tpu_custom_call.1} parent=11 // pred_check_branch
          %359 = sbr.rel (%p357) target = $region40
        $region39: #{tpu_custom_call.1} parent=11 // pred_region
          _
        $region40: #{tpu_custom_call.1} parent=11 // pred_fallthru
          _
      $region12: #{tpu_custom_call.1} parent=5 // pred_fallthru
        _
      %p360 = scmp.lt.s32.totalorder %s31, 4
      // Predicated region
      $region41: #{tpu_custom_call.1} parent=5 // pred_check
        %p361 = pneg %p360
      $region42: #{tpu_custom_call.1} parent=5 // pred_check_branch
        %363 = sbr.rel (%p361) target = $region44
      $region43: #{tpu_custom_call.1} parent=5 // pred_region
        // Predicated region
        $region45: #{tpu_custom_call.1} parent=43 // pred_check
          %p364 = pneg %p84
        $region46: #{tpu_custom_call.1} parent=43 // pred_check_branch
          %366 = sbr.rel (%p364) target = $region48
        $region47: #{tpu_custom_call.1} parent=43 // pred_region
          %s367 = sand.u32 %s74, 1
          %s368 = scalar_lea.sflag [#allocation6], %s367
          %s369 = sand.u32 %s74, 1
          %s370 = smul.addr %s369, 256
          %s371 = scalar_lea.vmem [#allocation5], %s370
          %s372 = smul.u32 32, %s38
          %s374 = ssub.s32 4096, 4096
          %375 = vsyncadd %s368, %s374
          %s376 = smul.addr %s372, 128
          %s377 = scalar_lea.hbm %s2, %s376
          %s378 = sshll.u32 %s371, 4
          %s379 = int_to_ptr.vmem [resolvable:$true] %s378
          %384 = dma.hbm_to_vmem [thread:$0]  %s377, 4096, %s379, %s368, 128, 128, 8
        $region48: #{tpu_custom_call.1} parent=43 // pred_fallthru
          _
        // Predicated region
        $region49: #{tpu_custom_call.1} parent=43 // pred_check
          %p385 = pneg %p114
        $region50: #{tpu_custom_call.1} parent=43 // pred_check_branch
          %387 = sbr.rel (%p385) target = $region52
        $region51: #{tpu_custom_call.1} parent=43 // pred_region
          %s388 = sand.u32 %s31, 1
          %s389 = scalar_lea.sflag [#allocation9], %s388
          %s390 = sand.u32 %s104, 1
          %s391 = smul.addr %s390, 128
          %s392 = scalar_lea.vmem [#allocation8], %s391
          %s393 = sld [smem:[#allocation4 + %s38]]
          %s394 = sadd.s32 %s393, %s39
          %s395 = smul.u32 32, %s394
          %s397 = ssub.s32 2048, 2048
          %398 = vsyncadd %s389, %s397
          %s399 = smul.addr %s395, 64
          %s400 = scalar_lea.hbm %s3, %s399
          %s401 = sshll.u32 %s392, 4
          %s402 = int_to_ptr.vmem [resolvable:$true] %s401
          %407 = dma.hbm_to_vmem [thread:$0]  %s400, 2048, %s402, %s389, 64, 64, 4
        $region52: #{tpu_custom_call.1} parent=43 // pred_fallthru
          _
        // Predicated region
        $region53: #{tpu_custom_call.1} parent=43 // pred_check
          %p408 = pneg %p146
        $region54: #{tpu_custom_call.1} parent=43 // pred_check_branch
          %410 = sbr.rel (%p408) target = $region56
        $region55: #{tpu_custom_call.1} parent=43 // pred_region
          %s411 = sand.u32 %s31, 1
          %s412 = scalar_lea.sflag [#allocation9], %s411
          %s413 = sand.u32 %s136, 1
          %s414 = smul.addr %s413, 128
          %s415 = scalar_lea.vmem [#allocation10], %s414
          %s416 = sld [smem:[#allocation4 + %s38]]
          %s417 = sadd.s32 %s416, %s39
          %s418 = smul.u32 8, %s38
          %s419 = smul.u32 2, %s417
          %s421 = ssub.s32 2048, 2048
          %422 = vsyncadd %s412, %s421
          %s423 = smul.addr %s418, 4
          %s424 = sadd.s32 %s419, %s423
          %s425 = smul.addr %s424, 128
          %s426 = scalar_lea.hbm %s4, %s425
          %s427 = sshll.u32 %s415, 4
          %s428 = int_to_ptr.vmem [resolvable:$true] %s427
          %433 = dma.hbm_to_vmem [thread:$0]  %s426, 2048, %s428, %s412, 512, 256, 16
        $region56: #{tpu_custom_call.1} parent=43 // pred_fallthru
          _
      $region44: #{tpu_custom_call.1} parent=5 // pred_fallthru
        _
      %p434 = scmp.le.s32.totalorder 1, %s31
      %p435 = scmp.lt.s32.totalorder %s31, 5
      %p436 = pnand %p434, %p435
      %p437 = pneg %p436
      // Predicated region
      $region57: #{tpu_custom_call.1} parent=5 // pred_check
        _
      $region58: #{tpu_custom_call.1} parent=5 // pred_check_branch
        %439 = sbr.rel (%p436) target = $region60
      $region59: #{tpu_custom_call.1} parent=5 // pred_region
        %s440 = ssub.s32 %s31, 1
        %s441 = sand.u32 %s77, 1
        %s442 = scalar_lea.sflag [#allocation6], %s441
        %s443 = sand.u32 %s77, 1
        %s444 = smul.addr %s443, 256
        %s445 = scalar_lea.vmem [#allocation5], %s444
        // Predicated region
        $region61: #{tpu_custom_call.1} parent=59 // pred_check
          %p446 = pneg %p90
        $region62: #{tpu_custom_call.1} parent=59 // pred_check_branch
          %448 = sbr.rel (%p446) target = $region64
        $region63: #{tpu_custom_call.1} parent=59 // pred_region
          %449 = dma.done %s442, 4096
        $region64: #{tpu_custom_call.1} parent=59 // pred_fallthru
          _
        %s450 = sand.u32 %s36, 1
        %s451 = scalar_lea.sflag [#allocation9], %s450
        %s452 = sand.u32 %s107, 1
        %s453 = smul.addr %s452, 128
        %s454 = scalar_lea.vmem [#allocation8], %s453
        // Predicated region
        $region65: #{tpu_custom_call.1} parent=59 // pred_check
          %p455 = pneg %p120
        $region66: #{tpu_custom_call.1} parent=59 // pred_check_branch
          %457 = sbr.rel (%p455) target = $region68
        $region67: #{tpu_custom_call.1} parent=59 // pred_region
          %458 = dma.done %s451, 2048
        $region68: #{tpu_custom_call.1} parent=59 // pred_fallthru
          _
        %s459 = sand.u32 %s36, 1
        %s460 = scalar_lea.sflag [#allocation9], %s459
        %s461 = sand.u32 %s139, 1
        %s462 = smul.addr %s461, 128
        %s463 = scalar_lea.vmem [#allocation10], %s462
        // Predicated region
        $region69: #{tpu_custom_call.1} parent=59 // pred_check
          %p464 = pneg %p152
        $region70: #{tpu_custom_call.1} parent=59 // pred_check_branch
          %466 = sbr.rel (%p464) target = $region72
        $region71: #{tpu_custom_call.1} parent=59 // pred_region
          %467 = dma.done %s460, 2048
        $region72: #{tpu_custom_call.1} parent=59 // pred_fallthru
          _
        // Predicated region
        $region73: #{tpu_custom_call.1} parent=59 // pred_check
          %p468 = pneg %p173
        $region74: #{tpu_custom_call.1} parent=59 // pred_check_branch
          %470 = sbr.rel (%p468) target = $region76
        $region75: #{tpu_custom_call.1} parent=59 // pred_region
          %471 = dma.done [#allocation12], 2048
        $region76: #{tpu_custom_call.1} parent=59 // pred_fallthru
          _
        // Predicated region
        $region77: #{tpu_custom_call.1} parent=59 // pred_check
          %p472 = pneg %p236
        $region78: #{tpu_custom_call.1} parent=59 // pred_check_branch
          %474 = sbr.rel (%p472) target = $region80
        $region79: #{tpu_custom_call.1} parent=59 // pred_region
          %475 = dma.done [#allocation12], 2048
        $region80: #{tpu_custom_call.1} parent=59 // pred_fallthru
          _
        %p476 = pneg %p64
        %p477 = pneg %p61
        %s478 = sand.u32 %s77, 1
        %s479 = scalar_lea.sflag [#allocation6], %s478
        %s480 = sand.u32 %s77, 1
        %s481 = smul.addr %s480, 256
        %s482 = scalar_lea.vmem [#allocation5], %s481
        %p483 = pneg %p90
        %p484 = pneg %p87
        %s485 = sand.u32 %s36, 1
        %s486 = scalar_lea.sflag [#allocation9], %s485
        %s487 = sand.u32 %s107, 1
        %s488 = smul.addr %s487, 128
        %s489 = scalar_lea.vmem [#allocation8], %s488
        %p490 = pneg %p120
        %p491 = pneg %p117
        %s492 = sand.u32 %s36, 1
        %s493 = scalar_lea.sflag [#allocation9], %s492
        %s494 = sand.u32 %s139, 1
        %s495 = smul.addr %s494, 128
        %s496 = scalar_lea.vmem [#allocation10], %s495
        %p497 = pneg %p152
        %p498 = pneg %p149
        %p499 = pneg %p173
        %p500 = pneg %p170
        %p501 = pneg %p194
        %p502 = pneg %p191
        %p503 = pneg %p215
        %p504 = pneg %p212
        %p505 = pneg %p236
        %p506 = pneg %p233
        %p507 = pneg %p257
        %p508 = pneg %p254
        %p509 = pneg %p278
        %p510 = pneg %p275
        %p511 = pneg %p304
        %p512 = pneg %p301
        %s513 = sand.u32 %s291, 1
        %s514 = scalar_lea.sflag [#allocation7], %s513
        %s515 = sand.u32 %s291, 1
        %s516 = smul.addr %s515, 256
        %s517 = scalar_lea.vmem [#allocation14], %s516
        %s518 = smul.u32 32, %s40
        %s519 = sld [smem:[#allocation4 + %s40]]
        %s520 = sadd.s32 %s519, %s41
        %s521 = smul.u32 32, %s520
        %s522 = sld [smem:[#allocation4 + %s40]]
        %s523 = sadd.s32 %s522, %s41
        %s524 = smul.u32 8, %s40
        %s525 = smul.u32 2, %s523
        %s526 = smul.u32 32, %s40
        %p528 = scmp.eq.s32.totalorder %s41, 0
        // Predicated region
        $region81: #{tpu_custom_call.1} parent=59 // pred_check
          %p529 = pneg %p528
        $region82: #{tpu_custom_call.1} parent=59 // pred_check_branch
          %531 = sbr.rel (%p529) target = $region84
        $region83: #{tpu_custom_call.1} parent=59 // pred_region
          %532 = vst [vmem:[#allocation2] sm:$0xff] 0.0
          %533 = vst [vmem:[#allocation2 + $0x8] sm:$0xff] 0.0
          %534 = vst [vmem:[#allocation2 + $0x10] sm:$0xff] 0.0
          %535 = vst [vmem:[#allocation2 + $0x18] sm:$0xff] 0.0
          %536 = vst [vmem:[#allocation2 + $0x20] sm:$0xff] 0.0
          %537 = vst [vmem:[#allocation2 + $0x28] sm:$0xff] 0.0
          %538 = vst [vmem:[#allocation2 + $0x30] sm:$0xff] 0.0
          %539 = vst [vmem:[#allocation2 + $0x38] sm:$0xff] 0.0
          %540 = vst [vmem:[#allocation2 + $0x40] sm:$0xff] 0.0
          %541 = vst [vmem:[#allocation2 + $0x48] sm:$0xff] 0.0
          %542 = vst [vmem:[#allocation2 + $0x50] sm:$0xff] 0.0
          %543 = vst [vmem:[#allocation2 + $0x58] sm:$0xff] 0.0
          %544 = vst [vmem:[#allocation2 + $0x60] sm:$0xff] 0.0
          %545 = vst [vmem:[#allocation2 + $0x68] sm:$0xff] 0.0
          %546 = vst [vmem:[#allocation2 + $0x70] sm:$0xff] 0.0
          %547 = vst [vmem:[#allocation2 + $0x78] sm:$0xff] 0.0
          %548 = vst [vmem:[#allocation2 + $0x80] sm:$0xff] 0.0
          %549 = vst [vmem:[#allocation2 + $0x88] sm:$0xff] 0.0
          %550 = vst [vmem:[#allocation2 + $0x90] sm:$0xff] 0.0
          %551 = vst [vmem:[#allocation2 + $0x98] sm:$0xff] 0.0
          %552 = vst [vmem:[#allocation2 + $0xa0] sm:$0xff] 0.0
          %553 = vst [vmem:[#allocation2 + $0xa8] sm:$0xff] 0.0
          %554 = vst [vmem:[#allocation2 + $0xb0] sm:$0xff] 0.0
          %555 = vst [vmem:[#allocation2 + $0xb8] sm:$0xff] 0.0
          %556 = vst [vmem:[#allocation2 + $0xc0] sm:$0xff] 0.0
          %557 = vst [vmem:[#allocation2 + $0xc8] sm:$0xff] 0.0
          %558 = vst [vmem:[#allocation2 + $0xd0] sm:$0xff] 0.0
          %559 = vst [vmem:[#allocation2 + $0xd8] sm:$0xff] 0.0
          %560 = vst [vmem:[#allocation2 + $0xe0] sm:$0xff] 0.0
          %561 = vst [vmem:[#allocation2 + $0xe8] sm:$0xff] 0.0
          %562 = vst [vmem:[#allocation2 + $0xf0] sm:$0xff] 0.0
          %563 = vst [vmem:[#allocation2 + $0xf8] sm:$0xff] 0.0
        $region84: #{tpu_custom_call.1} parent=59 // pred_fallthru
          _
        %v564 = vld [vmem:[#allocation2] sm:$0xff]
        %v565 = vld [vmem:[#allocation2 + $0x8] sm:$0xff]
        %v566 = vld [vmem:[#allocation2 + $0x10] sm:$0xff]
        %v567 = vld [vmem:[#allocation2 + $0x18] sm:$0xff]
        %v568 = vld [vmem:[#allocation2 + $0x20] sm:$0xff]
        %v569 = vld [vmem:[#allocation2 + $0x28] sm:$0xff]
        %v570 = vld [vmem:[#allocation2 + $0x30] sm:$0xff]
        %v571 = vld [vmem:[#allocation2 + $0x38] sm:$0xff]
        %v572 = vld [vmem:[#allocation2 + $0x40] sm:$0xff]
        %v573 = vld [vmem:[#allocation2 + $0x48] sm:$0xff]
        %v574 = vld [vmem:[#allocation2 + $0x50] sm:$0xff]
        %v575 = vld [vmem:[#allocation2 + $0x58] sm:$0xff]
        %v576 = vld [vmem:[#allocation2 + $0x60] sm:$0xff]
        %v577 = vld [vmem:[#allocation2 + $0x68] sm:$0xff]
        %v578 = vld [vmem:[#allocation2 + $0x70] sm:$0xff]
        %v579 = vld [vmem:[#allocation2 + $0x78] sm:$0xff]
        %v580 = vld [vmem:[#allocation2 + $0x80] sm:$0xff]
        %v581 = vld [vmem:[#allocation2 + $0x88] sm:$0xff]
        %v582 = vld [vmem:[#allocation2 + $0x90] sm:$0xff]
        %v583 = vld [vmem:[#allocation2 + $0x98] sm:$0xff]
        %v584 = vld [vmem:[#allocation2 + $0xa0] sm:$0xff]
        %v585 = vld [vmem:[#allocation2 + $0xa8] sm:$0xff]
        %v586 = vld [vmem:[#allocation2 + $0xb0] sm:$0xff]
        %v587 = vld [vmem:[#allocation2 + $0xb8] sm:$0xff]
        %v588 = vld [vmem:[#allocation2 + $0xc0] sm:$0xff]
        %v589 = vld [vmem:[#allocation2 + $0xc8] sm:$0xff]
        %v590 = vld [vmem:[#allocation2 + $0xd0] sm:$0xff]
        %v591 = vld [vmem:[#allocation2 + $0xd8] sm:$0xff]
        %v592 = vld [vmem:[#allocation2 + $0xe0] sm:$0xff]
        %v593 = vld [vmem:[#allocation2 + $0xe8] sm:$0xff]
        %v594 = vld [vmem:[#allocation2 + $0xf0] sm:$0xff]
        %v595 = vld [vmem:[#allocation2 + $0xf8] sm:$0xff]
        %v596 = vld [vmem:[%s463] sm:$0xff]
        %v597 = vld [vmem:[%s463 + $0x8] sm:$0xff]
        %v598 = vld [vmem:[%s463 + $0x10] sm:$0xff]
        %v599 = vld [vmem:[%s463 + $0x18] sm:$0xff]
        %v600 = vld [vmem:[%s463 + $0x20] sm:$0xff]
        %v601 = vld [vmem:[%s463 + $0x28] sm:$0xff]
        %v602 = vld [vmem:[%s463 + $0x30] sm:$0xff]
        %v603 = vld [vmem:[%s463 + $0x38] sm:$0xff]
        %v604 = vld [vmem:[%s463 + $0x40] sm:$0xff]
        %v605 = vld [vmem:[%s463 + $0x48] sm:$0xff]
        %v606 = vld [vmem:[%s463 + $0x50] sm:$0xff]
        %v607 = vld [vmem:[%s463 + $0x58] sm:$0xff]
        %v608 = vld [vmem:[%s463 + $0x60] sm:$0xff]
        %v609 = vld [vmem:[%s463 + $0x68] sm:$0xff]
        %v610 = vld [vmem:[%s463 + $0x70] sm:$0xff]
        %v611 = vld [vmem:[%s463 + $0x78] sm:$0xff]
        %v612 = vunpack.c.l.s8.bf16 %v596
        %v613 = vunpack.c.l.s8.bf16 %v597
        %v614 = vunpack.c.h.s8.bf16 %v596
        %v615 = vunpack.c.h.s8.bf16 %v597
        %v616 = vunpack.c.l.s8.bf16 %v598
        %v617 = vunpack.c.l.s8.bf16 %v599
        %v618 = vunpack.c.h.s8.bf16 %v598
        %v619 = vunpack.c.h.s8.bf16 %v599
        %v620 = vunpack.c.l.s8.bf16 %v600
        %v621 = vunpack.c.l.s8.bf16 %v601
        %v622 = vunpack.c.h.s8.bf16 %v600
        %v623 = vunpack.c.h.s8.bf16 %v601
        %v624 = vunpack.c.l.s8.bf16 %v602
        %v625 = vunpack.c.l.s8.bf16 %v603
        %v626 = vunpack.c.h.s8.bf16 %v602
        %v627 = vunpack.c.h.s8.bf16 %v603
        %v628 = vunpack.c.l.s8.bf16 %v604
        %v629 = vunpack.c.l.s8.bf16 %v605
        %v630 = vunpack.c.h.s8.bf16 %v604
        %v631 = vunpack.c.h.s8.bf16 %v605
        %v632 = vunpack.c.l.s8.bf16 %v606
        %v633 = vunpack.c.l.s8.bf16 %v607
        %v634 = vunpack.c.h.s8.bf16 %v606
        %v635 = vunpack.c.h.s8.bf16 %v607
        %v636 = vunpack.c.l.s8.bf16 %v608
        %v637 = vunpack.c.l.s8.bf16 %v609
        %v638 = vunpack.c.h.s8.bf16 %v608
        %v639 = vunpack.c.h.s8.bf16 %v609
        %v640 = vunpack.c.l.s8.bf16 %v610
        %v641 = vunpack.c.l.s8.bf16 %v611
        %v642 = vunpack.c.h.s8.bf16 %v610
        %v643 = vunpack.c.h.s8.bf16 %v611
        %v644 = vld [vmem:[%s454] sm:$0xf]
        %v645 = vld [vmem:[%s454 + $0x4] sm:$0xf]
        %v646 = vld [vmem:[%s454 + $0x8] sm:$0xf]
        %v647 = vld [vmem:[%s454 + $0xc] sm:$0xf]
        %v648 = vld [vmem:[%s454 + $0x10] sm:$0xf]
        %v649 = vld [vmem:[%s454 + $0x14] sm:$0xf]
        %v650 = vld [vmem:[%s454 + $0x18] sm:$0xf]
        %v651 = vld [vmem:[%s454 + $0x1c] sm:$0xf]
        %v652 = vld [vmem:[%s454 + $0x20] sm:$0xf]
        %v653 = vld [vmem:[%s454 + $0x24] sm:$0xf]
        %v654 = vld [vmem:[%s454 + $0x28] sm:$0xf]
        %v655 = vld [vmem:[%s454 + $0x2c] sm:$0xf]
        %v656 = vld [vmem:[%s454 + $0x30] sm:$0xf]
        %v657 = vld [vmem:[%s454 + $0x34] sm:$0xf]
        %v658 = vld [vmem:[%s454 + $0x38] sm:$0xf]
        %v659 = vld [vmem:[%s454 + $0x3c] sm:$0xf]
        %v660 = vld [vmem:[%s454 + $0x40] sm:$0xf]
        %v661 = vld [vmem:[%s454 + $0x44] sm:$0xf]
        %v662 = vld [vmem:[%s454 + $0x48] sm:$0xf]
        %v663 = vld [vmem:[%s454 + $0x4c] sm:$0xf]
        %v664 = vld [vmem:[%s454 + $0x50] sm:$0xf]
        %v665 = vld [vmem:[%s454 + $0x54] sm:$0xf]
        %v666 = vld [vmem:[%s454 + $0x58] sm:$0xf]
        %v667 = vld [vmem:[%s454 + $0x5c] sm:$0xf]
        %v668 = vld [vmem:[%s454 + $0x60] sm:$0xf]
        %v669 = vld [vmem:[%s454 + $0x64] sm:$0xf]
        %v670 = vld [vmem:[%s454 + $0x68] sm:$0xf]
        %v671 = vld [vmem:[%s454 + $0x6c] sm:$0xf]
        %v672 = vld [vmem:[%s454 + $0x70] sm:$0xf]
        %v673 = vld [vmem:[%s454 + $0x74] sm:$0xf]
        %v674 = vld [vmem:[%s454 + $0x78] sm:$0xf]
        %v675 = vld [vmem:[%s454 + $0x7c] sm:$0xf]
        %v708 = vunpack.c.l.b16 %v644
        %v709 = vunpack.c.l.b16 %v645
        %v710 = vunpack.c.l.b16 %v646
        %v711 = vunpack.c.l.b16 %v647
        %v712 = vunpack.c.l.b16 %v648
        %v713 = vunpack.c.l.b16 %v649
        %v714 = vunpack.c.l.b16 %v650
        %v715 = vunpack.c.l.b16 %v651
        %v716 = vunpack.c.l.b16 %v652
        %v717 = vunpack.c.l.b16 %v653
        %v718 = vunpack.c.l.b16 %v654
        %v719 = vunpack.c.l.b16 %v655
        %v720 = vunpack.c.l.b16 %v656
        %v721 = vunpack.c.l.b16 %v657
        %v722 = vunpack.c.l.b16 %v658
        %v723 = vunpack.c.l.b16 %v659
        %v724 = vunpack.c.l.b16 %v660
        %v725 = vunpack.c.l.b16 %v661
        %v726 = vunpack.c.l.b16 %v662
        %v727 = vunpack.c.l.b16 %v663
        %v728 = vunpack.c.l.b16 %v664
        %v729 = vunpack.c.l.b16 %v665
        %v730 = vunpack.c.l.b16 %v666
        %v731 = vunpack.c.l.b16 %v667
        %v732 = vunpack.c.l.b16 %v668
        %v733 = vunpack.c.l.b16 %v669
        %v734 = vunpack.c.l.b16 %v670
        %v735 = vunpack.c.l.b16 %v671
        %v736 = vunpack.c.l.b16 %v672
        %v737 = vunpack.c.l.b16 %v673
        %v738 = vunpack.c.l.b16 %v674
        %v739 = vunpack.c.l.b16 %v675
        %v740 = vpack.c.b16 %v709, %v708
        %v741 = vpack.c.b16 %v711, %v710
        %v742 = vpack.c.b16 %v713, %v712
        %v743 = vpack.c.b16 %v715, %v714
        %v744 = vpack.c.b16 %v717, %v716
        %v745 = vpack.c.b16 %v719, %v718
        %v746 = vpack.c.b16 %v721, %v720
        %v747 = vpack.c.b16 %v723, %v722
        %v748 = vpack.c.b16 %v725, %v724
        %v749 = vpack.c.b16 %v727, %v726
        %v750 = vpack.c.b16 %v729, %v728
        %v751 = vpack.c.b16 %v731, %v730
        %v752 = vpack.c.b16 %v733, %v732
        %v753 = vpack.c.b16 %v735, %v734
        %v754 = vpack.c.b16 %v737, %v736
        %v755 = vpack.c.b16 %v739, %v738
        %772 = vmatprep.subr.bf16.mxu0 0
        %773 = vmatpush1.bf16.msra.mxu0 %v740
        %774 = vmatprep.subr.bf16.mxu0 0
        %775 = vmatpush1.bf16.msra.mxu0 %v741
        %776 = vmatprep.subr.bf16.mxu0 0
        %777 = vmatpush1.bf16.msra.mxu0 %v742
        %778 = vmatprep.subr.bf16.mxu0 0
        %779 = vmatpush1.bf16.msra.mxu0 %v743
        %780 = vmatprep.subr.bf16.mxu0 0
        %781 = vmatpush1.bf16.msra.mxu0 %v744
        %782 = vmatprep.subr.bf16.mxu0 0
        %783 = vmatpush1.bf16.msra.mxu0 %v745
        %784 = vmatprep.subr.bf16.mxu0 0
        %785 = vmatpush1.bf16.msra.mxu0 %v746
        %786 = vmatprep.subr.bf16.mxu0 0
        %787 = vmatpush1.bf16.msra.mxu0 %v747
        %788 = vmatprep.subr.bf16.mxu0 0
        %789 = vmatpush1.bf16.msra.mxu0 %v748
        %790 = vmatprep.subr.bf16.mxu0 0
        %791 = vmatpush1.bf16.msra.mxu0 %v749
        %792 = vmatprep.subr.bf16.mxu0 0
        %793 = vmatpush1.bf16.msra.mxu0 %v750
        %794 = vmatprep.subr.bf16.mxu0 0
        %795 = vmatpush1.bf16.msra.mxu0 %v751
        %796 = vmatprep.subr.bf16.mxu0 0
        %797 = vmatpush1.bf16.msra.mxu0 %v752
        %798 = vmatprep.subr.bf16.mxu0 0
        %799 = vmatpush1.bf16.msra.mxu0 %v753
        %800 = vmatprep.subr.bf16.mxu0 0
        %801 = vmatpush1.bf16.msra.mxu0 %v754
        %802 = vmatprep.subr.bf16.mxu0 0
        %803 = vmatpush1.bf16.msra.mxu0 %v755
        %804 = vmatprep.mubr.bf16.mxu0 %v613
        %805 = vmatmul.mubr.bf16.gmra.mrb[0].mxu0 %v612
        %v806 = vpop.f32.mrb[0].mxu0
        %v807 = vadd.f32 0.0, %v806
        %v808 = vpop.f32.mrb[0].mxu0
        %v809 = vpop.f32.mrb[0].mxu0
        %v810 = vadd.f32 0.0, %v809
        %v811 = vpop.f32.mrb[0].mxu0
        %812 = vmatprep.mubr.bf16.mxu0 %v615
        %813 = vmatmul.mubr.bf16.gmra.mrb[0].mxu0 %v614
        %v814 = vpop.f32.mrb[0].mxu0
        %v815 = vadd.f32 0.0, %v814
        %v816 = vpop.f32.mrb[0].mxu0
        %v817 = vpop.f32.mrb[0].mxu0
        %v818 = vadd.f32 0.0, %v817
        %v819 = vpop.f32.mrb[0].mxu0
        %820 = vmatprep.mubr.bf16.mxu0 %v617
        %821 = vmatmul.mubr.bf16.gmra.mrb[0].mxu0 %v616
        %v822 = vpop.f32.mrb[0].mxu0
        %v823 = vadd.f32 0.0, %v822
        %v824 = vpop.f32.mrb[0].mxu0
        %v825 = vpop.f32.mrb[0].mxu0
        %v826 = vadd.f32 0.0, %v825
        %v827 = vpop.f32.mrb[0].mxu0
        %828 = vmatprep.mubr.bf16.mxu0 %v619
        %829 = vmatmul.mubr.bf16.gmra.mrb[0].mxu0 %v618
        %v830 = vpop.f32.mrb[0].mxu0
        %v831 = vadd.f32 0.0, %v830
        %v832 = vpop.f32.mrb[0].mxu0
        %v833 = vpop.f32.mrb[0].mxu0
        %v834 = vadd.f32 0.0, %v833
        %v835 = vpop.f32.mrb[0].mxu0
        %836 = vmatprep.mubr.bf16.mxu0 %v621
        %837 = vmatmul.mubr.bf16.gmra.mrb[0].mxu0 %v620
        %v838 = vpop.f32.mrb[0].mxu0
        %v839 = vadd.f32 0.0, %v838
        %v840 = vpop.f32.mrb[0].mxu0
        %v841 = vpop.f32.mrb[0].mxu0
        %v842 = vadd.f32 0.0, %v841
        %v843 = vpop.f32.mrb[0].mxu0
        %844 = vmatprep.mubr.bf16.mxu0 %v623
        %845 = vmatmul.mubr.bf16.gmra.mrb[0].mxu0 %v622
        %v846 = vpop.f32.mrb[0].mxu0
        %v847 = vadd.f32 0.0, %v846
        %v848 = vpop.f32.mrb[0].mxu0
        %v849 = vpop.f32.mrb[0].mxu0
        %v850 = vadd.f32 0.0, %v849
        %v851 = vpop.f32.mrb[0].mxu0
        %852 = vmatprep.mubr.bf16.mxu0 %v625
        %853 = vmatmul.mubr.bf16.gmra.mrb[0].mxu0 %v624
        %v854 = vpop.f32.mrb[0].mxu0
        %v855 = vadd.f32 0.0, %v854
        %v856 = vpop.f32.mrb[0].mxu0
        %v857 = vpop.f32.mrb[0].mxu0
        %v858 = vadd.f32 0.0, %v857
        %v859 = vpop.f32.mrb[0].mxu0
        %860 = vmatprep.mubr.bf16.mxu0 %v627
        %861 = vmatmul.mubr.bf16.gmra.mrb[0].mxu0 %v626
        %v862 = vpop.f32.mrb[0].mxu0
        %v863 = vadd.f32 0.0, %v862
        %v864 = vpop.f32.mrb[0].mxu0
        %v865 = vpop.f32.mrb[0].mxu0
        %v866 = vadd.f32 0.0, %v865
        %v867 = vpop.f32.mrb[0].mxu0
        %868 = vmatprep.mubr.bf16.mxu0 %v629
        %869 = vmatmul.mubr.bf16.gmra.mrb[0].mxu0 %v628
        %v870 = vpop.f32.mrb[0].mxu0
        %v871 = vadd.f32 0.0, %v870
        %v872 = vpop.f32.mrb[0].mxu0
        %v873 = vpop.f32.mrb[0].mxu0
        %v874 = vadd.f32 0.0, %v873
        %v875 = vpop.f32.mrb[0].mxu0
        %876 = vmatprep.mubr.bf16.mxu0 %v631
        %877 = vmatmul.mubr.bf16.gmra.mrb[0].mxu0 %v630
        %v878 = vpop.f32.mrb[0].mxu0
        %v879 = vadd.f32 0.0, %v878
        %v880 = vpop.f32.mrb[0].mxu0
        %v881 = vpop.f32.mrb[0].mxu0
        %v882 = vadd.f32 0.0, %v881
        %v883 = vpop.f32.mrb[0].mxu0
        %884 = vmatprep.mubr.bf16.mxu0 %v633
        %885 = vmatmul.mubr.bf16.gmra.mrb[0].mxu0 %v632
        %v886 = vpop.f32.mrb[0].mxu0
        %v887 = vadd.f32 0.0, %v886
        %v888 = vpop.f32.mrb[0].mxu0
        %v889 = vpop.f32.mrb[0].mxu0
        %v890 = vadd.f32 0.0, %v889
        %v891 = vpop.f32.mrb[0].mxu0
        %892 = vmatprep.mubr.bf16.mxu0 %v635
        %893 = vmatmul.mubr.bf16.gmra.mrb[0].mxu0 %v634
        %v894 = vpop.f32.mrb[0].mxu0
        %v895 = vadd.f32 0.0, %v894
        %v896 = vpop.f32.mrb[0].mxu0
        %v897 = vpop.f32.mrb[0].mxu0
        %v898 = vadd.f32 0.0, %v897
        %v899 = vpop.f32.mrb[0].mxu0
        %900 = vmatprep.mubr.bf16.mxu0 %v637
        %901 = vmatmul.mubr.bf16.gmra.mrb[0].mxu0 %v636
        %v902 = vpop.f32.mrb[0].mxu0
        %v903 = vadd.f32 0.0, %v902
        %v904 = vpop.f32.mrb[0].mxu0
        %v905 = vpop.f32.mrb[0].mxu0
        %v906 = vadd.f32 0.0, %v905
        %v907 = vpop.f32.mrb[0].mxu0
        %908 = vmatprep.mubr.bf16.mxu0 %v639
        %909 = vmatmul.mubr.bf16.gmra.mrb[0].mxu0 %v638
        %v910 = vpop.f32.mrb[0].mxu0
        %v911 = vadd.f32 0.0, %v910
        %v912 = vpop.f32.mrb[0].mxu0
        %v913 = vpop.f32.mrb[0].mxu0
        %v914 = vadd.f32 0.0, %v913
        %v915 = vpop.f32.mrb[0].mxu0
        %916 = vmatprep.mubr.bf16.mxu0 %v641
        %917 = vmatmul.mubr.bf16.gmra.mrb[0].mxu0 %v640
        %v918 = vpop.f32.mrb[0].mxu0
        %v919 = vadd.f32 0.0, %v918
        %v920 = vpop.f32.mrb[0].mxu0
        %v921 = vpop.f32.mrb[0].mxu0
        %v922 = vadd.f32 0.0, %v921
        %v923 = vpop.f32.mrb[0].mxu0
        %924 = vmatprep.mubr.bf16.mxu0 %v643
        %925 = vmatmul.mubr.bf16.gmra.mrb[0].mxu0 %v642
        %v926 = vpop.f32.mrb[0].mxu0
        %v927 = vadd.f32 0.0, %v926
        %v928 = vpop.f32.mrb[0].mxu0
        %v929 = vpop.f32.mrb[0].mxu0
        %v930 = vadd.f32 0.0, %v929
        %v931 = vpop.f32.mrb[0].mxu0
        %932 = vdwg.mxu0
        %v933 = vadd.f32 %v564, %v807
        %v934 = vadd.f32 %v565, %v810
        %v935 = vadd.f32 %v566, %v815
        %v936 = vadd.f32 %v567, %v818
        %v937 = vadd.f32 %v568, %v823
        %v938 = vadd.f32 %v569, %v826
        %v939 = vadd.f32 %v570, %v831
        %v940 = vadd.f32 %v571, %v834
        %v941 = vadd.f32 %v572, %v839
        %v942 = vadd.f32 %v573, %v842
        %v943 = vadd.f32 %v574, %v847
        %v944 = vadd.f32 %v575, %v850
        %v945 = vadd.f32 %v576, %v855
        %v946 = vadd.f32 %v577, %v858
        %v947 = vadd.f32 %v578, %v863
        %v948 = vadd.f32 %v579, %v866
        %v949 = vadd.f32 %v580, %v871
        %v950 = vadd.f32 %v581, %v874
        %v951 = vadd.f32 %v582, %v879
        %v952 = vadd.f32 %v583, %v882
        %v953 = vadd.f32 %v584, %v887
        %v954 = vadd.f32 %v585, %v890
        %v955 = vadd.f32 %v586, %v895
        %v956 = vadd.f32 %v587, %v898
        %v957 = vadd.f32 %v588, %v903
        %v958 = vadd.f32 %v589, %v906
        %v959 = vadd.f32 %v590, %v911
        %v960 = vadd.f32 %v591, %v914
        %v961 = vadd.f32 %v592, %v919
        %v962 = vadd.f32 %v593, %v922
        %v963 = vadd.f32 %v594, %v927
        %v964 = vadd.f32 %v595, %v930
        %965 = vst [vmem:[#allocation2] sm:$0xff] %v933
        %966 = vst [vmem:[#allocation2 + $0x8] sm:$0xff] %v934
        %967 = vst [vmem:[#allocation2 + $0x10] sm:$0xff] %v935
        %968 = vst [vmem:[#allocation2 + $0x18] sm:$0xff] %v936
        %969 = vst [vmem:[#allocation2 + $0x20] sm:$0xff] %v937
        %970 = vst [vmem:[#allocation2 + $0x28] sm:$0xff] %v938
        %971 = vst [vmem:[#allocation2 + $0x30] sm:$0xff] %v939
        %972 = vst [vmem:[#allocation2 + $0x38] sm:$0xff] %v940
        %973 = vst [vmem:[#allocation2 + $0x40] sm:$0xff] %v941
        %974 = vst [vmem:[#allocation2 + $0x48] sm:$0xff] %v942
        %975 = vst [vmem:[#allocation2 + $0x50] sm:$0xff] %v943
        %976 = vst [vmem:[#allocation2 + $0x58] sm:$0xff] %v944
        %977 = vst [vmem:[#allocation2 + $0x60] sm:$0xff] %v945
        %978 = vst [vmem:[#allocation2 + $0x68] sm:$0xff] %v946
        %979 = vst [vmem:[#allocation2 + $0x70] sm:$0xff] %v947
        %980 = vst [vmem:[#allocation2 + $0x78] sm:$0xff] %v948
        %981 = vst [vmem:[#allocation2 + $0x80] sm:$0xff] %v949
        %982 = vst [vmem:[#allocation2 + $0x88] sm:$0xff] %v950
        %983 = vst [vmem:[#allocation2 + $0x90] sm:$0xff] %v951
        %984 = vst [vmem:[#allocation2 + $0x98] sm:$0xff] %v952
        %985 = vst [vmem:[#allocation2 + $0xa0] sm:$0xff] %v953
        %986 = vst [vmem:[#allocation2 + $0xa8] sm:$0xff] %v954
        %987 = vst [vmem:[#allocation2 + $0xb0] sm:$0xff] %v955
        %988 = vst [vmem:[#allocation2 + $0xb8] sm:$0xff] %v956
        %989 = vst [vmem:[#allocation2 + $0xc0] sm:$0xff] %v957
        %990 = vst [vmem:[#allocation2 + $0xc8] sm:$0xff] %v958
        %991 = vst [vmem:[#allocation2 + $0xd0] sm:$0xff] %v959
        %992 = vst [vmem:[#allocation2 + $0xd8] sm:$0xff] %v960
        %993 = vst [vmem:[#allocation2 + $0xe0] sm:$0xff] %v961
        %994 = vst [vmem:[#allocation2 + $0xe8] sm:$0xff] %v962
        %995 = vst [vmem:[#allocation2 + $0xf0] sm:$0xff] %v963
        %996 = vst [vmem:[#allocation2 + $0xf8] sm:$0xff] %v964
        %p997 = scmp.eq.s32.totalorder %s41, 1
        // Predicated region
        $region85: #{tpu_custom_call.1} parent=59 // pred_check
          %p998 = pneg %p997
        $region86: #{tpu_custom_call.1} parent=59 // pred_check_branch
          %1000 = sbr.rel (%p998) target = $region88
        $region87: #{tpu_custom_call.1} parent=59 // pred_region
          %v1001 = vld [vmem:[%s1] sm:$0x1]
          %v1002 = vld [vmem:[%s445] sm:$0xff]
          %v1003 = vld [vmem:[%s445 + $0x8] sm:$0xff]
          %v1004 = vld [vmem:[%s445 + $0x10] sm:$0xff]
          %v1005 = vld [vmem:[%s445 + $0x18] sm:$0xff]
          %v1006 = vld [vmem:[%s445 + $0x20] sm:$0xff]
          %v1007 = vld [vmem:[%s445 + $0x28] sm:$0xff]
          %v1008 = vld [vmem:[%s445 + $0x30] sm:$0xff]
          %v1009 = vld [vmem:[%s445 + $0x38] sm:$0xff]
          %v1010 = vld [vmem:[%s445 + $0x40] sm:$0xff]
          %v1011 = vld [vmem:[%s445 + $0x48] sm:$0xff]
          %v1012 = vld [vmem:[%s445 + $0x50] sm:$0xff]
          %v1013 = vld [vmem:[%s445 + $0x58] sm:$0xff]
          %v1014 = vld [vmem:[%s445 + $0x60] sm:$0xff]
          %v1015 = vld [vmem:[%s445 + $0x68] sm:$0xff]
          %v1016 = vld [vmem:[%s445 + $0x70] sm:$0xff]
          %v1017 = vld [vmem:[%s445 + $0x78] sm:$0xff]
          %v1018 = vld [vmem:[%s445 + $0x80] sm:$0xff]
          %v1019 = vld [vmem:[%s445 + $0x88] sm:$0xff]
          %v1020 = vld [vmem:[%s445 + $0x90] sm:$0xff]
          %v1021 = vld [vmem:[%s445 + $0x98] sm:$0xff]
          %v1022 = vld [vmem:[%s445 + $0xa0] sm:$0xff]
          %v1023 = vld [vmem:[%s445 + $0xa8] sm:$0xff]
          %v1024 = vld [vmem:[%s445 + $0xb0] sm:$0xff]
          %v1025 = vld [vmem:[%s445 + $0xb8] sm:$0xff]
          %v1026 = vld [vmem:[%s445 + $0xc0] sm:$0xff]
          %v1027 = vld [vmem:[%s445 + $0xc8] sm:$0xff]
          %v1028 = vld [vmem:[%s445 + $0xd0] sm:$0xff]
          %v1029 = vld [vmem:[%s445 + $0xd8] sm:$0xff]
          %v1030 = vld [vmem:[%s445 + $0xe0] sm:$0xff]
          %v1031 = vld [vmem:[%s445 + $0xe8] sm:$0xff]
          %v1032 = vld [vmem:[%s445 + $0xf0] sm:$0xff]
          %v1033 = vld [vmem:[%s445 + $0xf8] sm:$0xff]
          %v1035 = vlaneseq
          %v1036 = vshrl.u32 %v1035, 7
          %v1037 = vsub.s32 0, %v1036
          %v1038 = vrot.slane %v1001, %v1037
          %v1040 = vmul.f32 %v1038, %v1002
          %v1041 = vmul.f32 %v1038, %v1003
          %v1042 = vmul.f32 %v1038, %v1004
          %v1043 = vmul.f32 %v1038, %v1005
          %v1044 = vmul.f32 %v1038, %v1006
          %v1045 = vmul.f32 %v1038, %v1007
          %v1046 = vmul.f32 %v1038, %v1008
          %v1047 = vmul.f32 %v1038, %v1009
          %v1048 = vmul.f32 %v1038, %v1010
          %v1049 = vmul.f32 %v1038, %v1011
          %v1050 = vmul.f32 %v1038, %v1012
          %v1051 = vmul.f32 %v1038, %v1013
          %v1052 = vmul.f32 %v1038, %v1014
          %v1053 = vmul.f32 %v1038, %v1015
          %v1054 = vmul.f32 %v1038, %v1016
          %v1055 = vmul.f32 %v1038, %v1017
          %v1056 = vmul.f32 %v1038, %v1018
          %v1057 = vmul.f32 %v1038, %v1019
          %v1058 = vmul.f32 %v1038, %v1020
          %v1059 = vmul.f32 %v1038, %v1021
          %v1060 = vmul.f32 %v1038, %v1022
          %v1061 = vmul.f32 %v1038, %v1023
          %v1062 = vmul.f32 %v1038, %v1024
          %v1063 = vmul.f32 %v1038, %v1025
          %v1064 = vmul.f32 %v1038, %v1026
          %v1065 = vmul.f32 %v1038, %v1027
          %v1066 = vmul.f32 %v1038, %v1028
          %v1067 = vmul.f32 %v1038, %v1029
          %v1068 = vmul.f32 %v1038, %v1030
          %v1069 = vmul.f32 %v1038, %v1031
          %v1070 = vmul.f32 %v1038, %v1032
          %v1071 = vmul.f32 %v1038, %v1033
          %v1072 = vld [vmem:[#allocation2] sm:$0xff]
          %v1073 = vld [vmem:[#allocation2 + $0x8] sm:$0xff]
          %v1074 = vld [vmem:[#allocation2 + $0x10] sm:$0xff]
          %v1075 = vld [vmem:[#allocation2 + $0x18] sm:$0xff]
          %v1076 = vld [vmem:[#allocation2 + $0x20] sm:$0xff]
          %v1077 = vld [vmem:[#allocation2 + $0x28] sm:$0xff]
          %v1078 = vld [vmem:[#allocation2 + $0x30] sm:$0xff]
          %v1079 = vld [vmem:[#allocation2 + $0x38] sm:$0xff]
          %v1080 = vld [vmem:[#allocation2 + $0x40] sm:$0xff]
          %v1081 = vld [vmem:[#allocation2 + $0x48] sm:$0xff]
          %v1082 = vld [vmem:[#allocation2 + $0x50] sm:$0xff]
          %v1083 = vld [vmem:[#allocation2 + $0x58] sm:$0xff]
          %v1084 = vld [vmem:[#allocation2 + $0x60] sm:$0xff]
          %v1085 = vld [vmem:[#allocation2 + $0x68] sm:$0xff]
          %v1086 = vld [vmem:[#allocation2 + $0x70] sm:$0xff]
          %v1087 = vld [vmem:[#allocation2 + $0x78] sm:$0xff]
          %v1088 = vld [vmem:[#allocation2 + $0x80] sm:$0xff]
          %v1089 = vld [vmem:[#allocation2 + $0x88] sm:$0xff]
          %v1090 = vld [vmem:[#allocation2 + $0x90] sm:$0xff]
          %v1091 = vld [vmem:[#allocation2 + $0x98] sm:$0xff]
          %v1092 = vld [vmem:[#allocation2 + $0xa0] sm:$0xff]
          %v1093 = vld [vmem:[#allocation2 + $0xa8] sm:$0xff]
          %v1094 = vld [vmem:[#allocation2 + $0xb0] sm:$0xff]
          %v1095 = vld [vmem:[#allocation2 + $0xb8] sm:$0xff]
          %v1096 = vld [vmem:[#allocation2 + $0xc0] sm:$0xff]
          %v1097 = vld [vmem:[#allocation2 + $0xc8] sm:$0xff]
          %v1098 = vld [vmem:[#allocation2 + $0xd0] sm:$0xff]
          %v1099 = vld [vmem:[#allocation2 + $0xd8] sm:$0xff]
          %v1100 = vld [vmem:[#allocation2 + $0xe0] sm:$0xff]
          %v1101 = vld [vmem:[#allocation2 + $0xe8] sm:$0xff]
          %v1102 = vld [vmem:[#allocation2 + $0xf0] sm:$0xff]
          %v1103 = vld [vmem:[#allocation2 + $0xf8] sm:$0xff]
          %v1104 = vadd.f32 %v1040, %v1072
          %v1105 = vadd.f32 %v1041, %v1073
          %v1106 = vadd.f32 %v1042, %v1074
          %v1107 = vadd.f32 %v1043, %v1075
          %v1108 = vadd.f32 %v1044, %v1076
          %v1109 = vadd.f32 %v1045, %v1077
          %v1110 = vadd.f32 %v1046, %v1078
          %v1111 = vadd.f32 %v1047, %v1079
          %v1112 = vadd.f32 %v1048, %v1080
          %v1113 = vadd.f32 %v1049, %v1081
          %v1114 = vadd.f32 %v1050, %v1082
          %v1115 = vadd.f32 %v1051, %v1083
          %v1116 = vadd.f32 %v1052, %v1084
          %v1117 = vadd.f32 %v1053, %v1085
          %v1118 = vadd.f32 %v1054, %v1086
          %v1119 = vadd.f32 %v1055, %v1087
          %v1120 = vadd.f32 %v1056, %v1088
          %v1121 = vadd.f32 %v1057, %v1089
          %v1122 = vadd.f32 %v1058, %v1090
          %v1123 = vadd.f32 %v1059, %v1091
          %v1124 = vadd.f32 %v1060, %v1092
          %v1125 = vadd.f32 %v1061, %v1093
          %v1126 = vadd.f32 %v1062, %v1094
          %v1127 = vadd.f32 %v1063, %v1095
          %v1128 = vadd.f32 %v1064, %v1096
          %v1129 = vadd.f32 %v1065, %v1097
          %v1130 = vadd.f32 %v1066, %v1098
          %v1131 = vadd.f32 %v1067, %v1099
          %v1132 = vadd.f32 %v1068, %v1100
          %v1133 = vadd.f32 %v1069, %v1101
          %v1134 = vadd.f32 %v1070, %v1102
          %v1135 = vadd.f32 %v1071, %v1103
          %v1136 = vpack.c.bf16 %v1105, %v1104
          %v1137 = vpack.c.bf16 %v1107, %v1106
          %v1138 = vpack.c.bf16 %v1109, %v1108
          %v1139 = vpack.c.bf16 %v1111, %v1110
          %v1140 = vpack.c.bf16 %v1113, %v1112
          %v1141 = vpack.c.bf16 %v1115, %v1114
          %v1142 = vpack.c.bf16 %v1117, %v1116
          %v1143 = vpack.c.bf16 %v1119, %v1118
          %v1144 = vpack.c.bf16 %v1121, %v1120
          %v1145 = vpack.c.bf16 %v1123, %v1122
          %v1146 = vpack.c.bf16 %v1125, %v1124
          %v1147 = vpack.c.bf16 %v1127, %v1126
          %v1148 = vpack.c.bf16 %v1129, %v1128
          %v1149 = vpack.c.bf16 %v1131, %v1130
          %v1150 = vpack.c.bf16 %v1133, %v1132
          %v1151 = vpack.c.bf16 %v1135, %v1134
          %v1152 = vld [vmem:[#allocation11] sm:$0xff]
          %v1153 = vld [vmem:[#allocation11 + $0x8] sm:$0xff]
          %v1154 = vld [vmem:[#allocation11 + $0x10] sm:$0xff]
          %v1155 = vld [vmem:[#allocation11 + $0x18] sm:$0xff]
          %v1156 = vld [vmem:[#allocation11 + $0x20] sm:$0xff]
          %v1157 = vld [vmem:[#allocation11 + $0x28] sm:$0xff]
          %v1158 = vld [vmem:[#allocation11 + $0x30] sm:$0xff]
          %v1159 = vld [vmem:[#allocation11 + $0x38] sm:$0xff]
          %v1160 = vld [vmem:[#allocation11 + $0x40] sm:$0xff]
          %v1161 = vld [vmem:[#allocation11 + $0x48] sm:$0xff]
          %v1162 = vld [vmem:[#allocation11 + $0x50] sm:$0xff]
          %v1163 = vld [vmem:[#allocation11 + $0x58] sm:$0xff]
          %v1164 = vld [vmem:[#allocation11 + $0x60] sm:$0xff]
          %v1165 = vld [vmem:[#allocation11 + $0x68] sm:$0xff]
          %v1166 = vld [vmem:[#allocation11 + $0x70] sm:$0xff]
          %v1167 = vld [vmem:[#allocation11 + $0x78] sm:$0xff]
          %v1184 = vunpack.c.l.b16 %v1152
          %v1185 = vunpack.c.h.b16 %v1152
          %v1186 = vunpack.c.l.b16 %v1153
          %v1187 = vunpack.c.h.b16 %v1153
          %v1188 = vunpack.c.l.b16 %v1154
          %v1189 = vunpack.c.h.b16 %v1154
          %v1190 = vunpack.c.l.b16 %v1155
          %v1191 = vunpack.c.h.b16 %v1155
          %v1192 = vunpack.c.l.b16 %v1156
          %v1193 = vunpack.c.h.b16 %v1156
          %v1194 = vunpack.c.l.b16 %v1157
          %v1195 = vunpack.c.h.b16 %v1157
          %v1196 = vunpack.c.l.b16 %v1158
          %v1197 = vunpack.c.h.b16 %v1158
          %v1198 = vunpack.c.l.b16 %v1159
          %v1199 = vunpack.c.h.b16 %v1159
          %v1200 = vunpack.c.l.b16 %v1160
          %v1201 = vunpack.c.h.b16 %v1160
          %v1202 = vunpack.c.l.b16 %v1161
          %v1203 = vunpack.c.h.b16 %v1161
          %v1204 = vunpack.c.l.b16 %v1162
          %v1205 = vunpack.c.h.b16 %v1162
          %v1206 = vunpack.c.l.b16 %v1163
          %v1207 = vunpack.c.h.b16 %v1163
          %v1208 = vunpack.c.l.b16 %v1164
          %v1209 = vunpack.c.h.b16 %v1164
          %v1210 = vunpack.c.l.b16 %v1165
          %v1211 = vunpack.c.h.b16 %v1165
          %v1212 = vunpack.c.l.b16 %v1166
          %v1213 = vunpack.c.h.b16 %v1166
          %v1214 = vunpack.c.l.b16 %v1167
          %v1215 = vunpack.c.h.b16 %v1167
          %v1216 = vpack.c.b16 %v1186, %v1184
          %v1217 = vpack.c.b16 %v1187, %v1185
          %v1218 = vpack.c.b16 %v1190, %v1188
          %v1219 = vpack.c.b16 %v1191, %v1189
          %v1220 = vpack.c.b16 %v1194, %v1192
          %v1221 = vpack.c.b16 %v1195, %v1193
          %v1222 = vpack.c.b16 %v1198, %v1196
          %v1223 = vpack.c.b16 %v1199, %v1197
          %v1224 = vpack.c.b16 %v1202, %v1200
          %v1225 = vpack.c.b16 %v1203, %v1201
          %v1226 = vpack.c.b16 %v1206, %v1204
          %v1227 = vpack.c.b16 %v1207, %v1205
          %v1228 = vpack.c.b16 %v1210, %v1208
          %v1229 = vpack.c.b16 %v1211, %v1209
          %v1230 = vpack.c.b16 %v1214, %v1212
          %v1231 = vpack.c.b16 %v1215, %v1213
          %1248 = vmatprep.subr.bf16.mxu0 %v1217
          %1249 = vmatpush1.bf16.msra.mxu0 %v1216
          %1250 = vmatprep.subr.bf16.mxu0 %v1219
          %1251 = vmatpush1.bf16.msra.mxu0 %v1218
          %1252 = vmatprep.subr.bf16.mxu0 %v1221
          %1253 = vmatpush1.bf16.msra.mxu0 %v1220
          %1254 = vmatprep.subr.bf16.mxu0 %v1223
          %1255 = vmatpush1.bf16.msra.mxu0 %v1222
          %1256 = vmatprep.subr.bf16.mxu0 %v1225
          %1257 = vmatpush1.bf16.msra.mxu0 %v1224
          %1258 = vmatprep.subr.bf16.mxu0 %v1227
          %1259 = vmatpush1.bf16.msra.mxu0 %v1226
          %1260 = vmatprep.subr.bf16.mxu0 %v1229
          %1261 = vmatpush1.bf16.msra.mxu0 %v1228
          %1262 = vmatprep.subr.bf16.mxu0 %v1231
          %1263 = vmatpush1.bf16.msra.mxu0 %v1230
          %1264 = vmatprep.subr.bf16.mxu0 0
          %1265 = vmatpush1.bf16.msra.mxu0 0
          %1266 = vmatprep.subr.bf16.mxu0 0
          %1267 = vmatpush1.bf16.msra.mxu0 0
          %1268 = vmatprep.subr.bf16.mxu0 0
          %1269 = vmatpush1.bf16.msra.mxu0 0
          %1270 = vmatprep.subr.bf16.mxu0 0
          %1271 = vmatpush1.bf16.msra.mxu0 0
          %1272 = vmatprep.subr.bf16.mxu0 0
          %1273 = vmatpush1.bf16.msra.mxu0 0
          %1274 = vmatprep.subr.bf16.mxu0 0
          %1275 = vmatpush1.bf16.msra.mxu0 0
          %1276 = vmatprep.subr.bf16.mxu0 0
          %1277 = vmatpush1.bf16.msra.mxu0 0
          %1278 = vmatprep.subr.bf16.mxu0 0
          %1279 = vmatpush1.bf16.msra.mxu0 0
          %1280 = vmatprep.mubr.bf16.mxu0 0
          %1281 = vmatmul.mubr.bf16.gmra.mrb[0].mxu0 %v1136
          %v1282 = vpop.f32.mrb[0].mxu0
          %v1283 = vadd.f32 0.0, %v1282
          %v1284 = vpop.f32.mrb[0].mxu0
          %v1285 = vadd.f32 0.0, %v1284
          %v1286 = vpop.f32.mrb[0].mxu0
          %v1287 = vadd.f32 0.0, %v1286
          %v1288 = vpop.f32.mrb[0].mxu0
          %v1289 = vadd.f32 0.0, %v1288
          %1290 = vmatprep.mubr.bf16.mxu0 0
          %1291 = vmatmul.mubr.bf16.gmra.mrb[0].mxu0 %v1137
          %v1292 = vpop.f32.mrb[0].mxu0
          %v1293 = vadd.f32 0.0, %v1292
          %v1294 = vpop.f32.mrb[0].mxu0
          %v1295 = vadd.f32 0.0, %v1294
          %v1296 = vpop.f32.mrb[0].mxu0
          %v1297 = vadd.f32 0.0, %v1296
          %v1298 = vpop.f32.mrb[0].mxu0
          %v1299 = vadd.f32 0.0, %v1298
          %1300 = vmatprep.mubr.bf16.mxu0 0
          %1301 = vmatmul.mubr.bf16.gmra.mrb[0].mxu0 %v1138
          %v1302 = vpop.f32.mrb[0].mxu0
          %v1303 = vadd.f32 0.0, %v1302
          %v1304 = vpop.f32.mrb[0].mxu0
          %v1305 = vadd.f32 0.0, %v1304
          %v1306 = vpop.f32.mrb[0].mxu0
          %v1307 = vadd.f32 0.0, %v1306
          %v1308 = vpop.f32.mrb[0].mxu0
          %v1309 = vadd.f32 0.0, %v1308
          %1310 = vmatprep.mubr.bf16.mxu0 0
          %1311 = vmatmul.mubr.bf16.gmra.mrb[0].mxu0 %v1139
          %v1312 = vpop.f32.mrb[0].mxu0
          %v1313 = vadd.f32 0.0, %v1312
          %v1314 = vpop.f32.mrb[0].mxu0
          %v1315 = vadd.f32 0.0, %v1314
          %v1316 = vpop.f32.mrb[0].mxu0
          %v1317 = vadd.f32 0.0, %v1316
          %v1318 = vpop.f32.mrb[0].mxu0
          %v1319 = vadd.f32 0.0, %v1318
          %1320 = vmatprep.mubr.bf16.mxu0 0
          %1321 = vmatmul.mubr.bf16.gmra.mrb[0].mxu0 %v1140
          %v1322 = vpop.f32.mrb[0].mxu0
          %v1323 = vadd.f32 0.0, %v1322
          %v1324 = vpop.f32.mrb[0].mxu0
          %v1325 = vadd.f32 0.0, %v1324
          %v1326 = vpop.f32.mrb[0].mxu0
          %v1327 = vadd.f32 0.0, %v1326
          %v1328 = vpop.f32.mrb[0].mxu0
          %v1329 = vadd.f32 0.0, %v1328
          %1330 = vmatprep.mubr.bf16.mxu0 0
          %1331 = vmatmul.mubr.bf16.gmra.mrb[0].mxu0 %v1141
          %v1332 = vpop.f32.mrb[0].mxu0
          %v1333 = vadd.f32 0.0, %v1332
          %v1334 = vpop.f32.mrb[0].mxu0
          %v1335 = vadd.f32 0.0, %v1334
          %v1336 = vpop.f32.mrb[0].mxu0
          %v1337 = vadd.f32 0.0, %v1336
          %v1338 = vpop.f32.mrb[0].mxu0
          %v1339 = vadd.f32 0.0, %v1338
          %1340 = vmatprep.mubr.bf16.mxu0 0
          %1341 = vmatmul.mubr.bf16.gmra.mrb[0].mxu0 %v1142
          %v1342 = vpop.f32.mrb[0].mxu0
          %v1343 = vadd.f32 0.0, %v1342
          %v1344 = vpop.f32.mrb[0].mxu0
          %v1345 = vadd.f32 0.0, %v1344
          %v1346 = vpop.f32.mrb[0].mxu0
          %v1347 = vadd.f32 0.0, %v1346
          %v1348 = vpop.f32.mrb[0].mxu0
          %v1349 = vadd.f32 0.0, %v1348
          %1350 = vmatprep.mubr.bf16.mxu0 0
          %1351 = vmatmul.mubr.bf16.gmra.mrb[0].mxu0 %v1143
          %v1352 = vpop.f32.mrb[0].mxu0
          %v1353 = vadd.f32 0.0, %v1352
          %v1354 = vpop.f32.mrb[0].mxu0
          %v1355 = vadd.f32 0.0, %v1354
          %v1356 = vpop.f32.mrb[0].mxu0
          %v1357 = vadd.f32 0.0, %v1356
          %v1358 = vpop.f32.mrb[0].mxu0
          %v1359 = vadd.f32 0.0, %v1358
          %1360 = vmatprep.mubr.bf16.mxu0 0
          %1361 = vmatmul.mubr.bf16.gmra.mrb[0].mxu0 %v1144
          %v1362 = vpop.f32.mrb[0].mxu0
          %v1363 = vadd.f32 0.0, %v1362
          %v1364 = vpop.f32.mrb[0].mxu0
          %v1365 = vadd.f32 0.0, %v1364
          %v1366 = vpop.f32.mrb[0].mxu0
          %v1367 = vadd.f32 0.0, %v1366
          %v1368 = vpop.f32.mrb[0].mxu0
          %v1369 = vadd.f32 0.0, %v1368
          %1370 = vmatprep.mubr.bf16.mxu0 0
          %1371 = vmatmul.mubr.bf16.gmra.mrb[0].mxu0 %v1145
          %v1372 = vpop.f32.mrb[0].mxu0
          %v1373 = vadd.f32 0.0, %v1372
          %v1374 = vpop.f32.mrb[0].mxu0
          %v1375 = vadd.f32 0.0, %v1374
          %v1376 = vpop.f32.mrb[0].mxu0
          %v1377 = vadd.f32 0.0, %v1376
          %v1378 = vpop.f32.mrb[0].mxu0
          %v1379 = vadd.f32 0.0, %v1378
          %1380 = vmatprep.mubr.bf16.mxu0 0
          %1381 = vmatmul.mubr.bf16.gmra.mrb[0].mxu0 %v1146
          %v1382 = vpop.f32.mrb[0].mxu0
          %v1383 = vadd.f32 0.0, %v1382
          %v1384 = vpop.f32.mrb[0].mxu0
          %v1385 = vadd.f32 0.0, %v1384
          %v1386 = vpop.f32.mrb[0].mxu0
          %v1387 = vadd.f32 0.0, %v1386
          %v1388 = vpop.f32.mrb[0].mxu0
          %v1389 = vadd.f32 0.0, %v1388
          %1390 = vmatprep.mubr.bf16.mxu0 0
          %1391 = vmatmul.mubr.bf16.gmra.mrb[0].mxu0 %v1147
          %v1392 = vpop.f32.mrb[0].mxu0
          %v1393 = vadd.f32 0.0, %v1392
          %v1394 = vpop.f32.mrb[0].mxu0
          %v1395 = vadd.f32 0.0, %v1394
          %v1396 = vpop.f32.mrb[0].mxu0
          %v1397 = vadd.f32 0.0, %v1396
          %v1398 = vpop.f32.mrb[0].mxu0
          %v1399 = vadd.f32 0.0, %v1398
          %1400 = vmatprep.mubr.bf16.mxu0 0
          %1401 = vmatmul.mubr.bf16.gmra.mrb[0].mxu0 %v1148
          %v1402 = vpop.f32.mrb[0].mxu0
          %v1403 = vadd.f32 0.0, %v1402
          %v1404 = vpop.f32.mrb[0].mxu0
          %v1405 = vadd.f32 0.0, %v1404
          %v1406 = vpop.f32.mrb[0].mxu0
          %v1407 = vadd.f32 0.0, %v1406
          %v1408 = vpop.f32.mrb[0].mxu0
          %v1409 = vadd.f32 0.0, %v1408
          %1410 = vmatprep.mubr.bf16.mxu0 0
          %1411 = vmatmul.mubr.bf16.gmra.mrb[0].mxu0 %v1149
          %v1412 = vpop.f32.mrb[0].mxu0
          %v1413 = vadd.f32 0.0, %v1412
          %v1414 = vpop.f32.mrb[0].mxu0
          %v1415 = vadd.f32 0.0, %v1414
          %v1416 = vpop.f32.mrb[0].mxu0
          %v1417 = vadd.f32 0.0, %v1416
          %v1418 = vpop.f32.mrb[0].mxu0
          %v1419 = vadd.f32 0.0, %v1418
          %1420 = vmatprep.mubr.bf16.mxu0 0
          %1421 = vmatmul.mubr.bf16.gmra.mrb[0].mxu0 %v1150
          %v1422 = vpop.f32.mrb[0].mxu0
          %v1423 = vadd.f32 0.0, %v1422
          %v1424 = vpop.f32.mrb[0].mxu0
          %v1425 = vadd.f32 0.0, %v1424
          %v1426 = vpop.f32.mrb[0].mxu0
          %v1427 = vadd.f32 0.0, %v1426
          %v1428 = vpop.f32.mrb[0].mxu0
          %v1429 = vadd.f32 0.0, %v1428
          %1430 = vmatprep.mubr.bf16.mxu0 0
          %1431 = vmatmul.mubr.bf16.gmra.mrb[0].mxu0 %v1151
          %v1432 = vpop.f32.mrb[0].mxu0
          %v1433 = vadd.f32 0.0, %v1432
          %v1434 = vpop.f32.mrb[0].mxu0
          %v1435 = vadd.f32 0.0, %v1434
          %v1436 = vpop.f32.mrb[0].mxu0
          %v1437 = vadd.f32 0.0, %v1436
          %v1438 = vpop.f32.mrb[0].mxu0
          %v1439 = vadd.f32 0.0, %v1438
          %1440 = vdwg.mxu0
          %v1441 = vld [vmem:[%s6] sm:$0x3]
          %v1443 = vlaneseq
          %v1444 = vshrl.u32 %v1443, 7
          %v1445 = vsub.s32 0, %v1444
          %v1446 = vrot.slane %v1441, %v1445
          %v1447 = vlaneseq
          %v1448 = vshrl.u32 %v1447, 7
          %v1449 = vsub.s32 1, %v1448
          %v1450 = vrot.slane %v1441, %v1449
          %v1453 = vmul.f32 %v1283, %v1446
          %v1454 = vmul.f32 %v1285, %v1450
          %v1455 = vmul.f32 %v1287, %v1446
          %v1456 = vmul.f32 %v1289, %v1450
          %v1457 = vmul.f32 %v1293, %v1446
          %v1458 = vmul.f32 %v1295, %v1450
          %v1459 = vmul.f32 %v1297, %v1446
          %v1460 = vmul.f32 %v1299, %v1450
          %v1461 = vmul.f32 %v1303, %v1446
          %v1462 = vmul.f32 %v1305, %v1450
          %v1463 = vmul.f32 %v1307, %v1446
          %v1464 = vmul.f32 %v1309, %v1450
          %v1465 = vmul.f32 %v1313, %v1446
          %v1466 = vmul.f32 %v1315, %v1450
          %v1467 = vmul.f32 %v1317, %v1446
          %v1468 = vmul.f32 %v1319, %v1450
          %v1469 = vmul.f32 %v1323, %v1446
          %v1470 = vmul.f32 %v1325, %v1450
          %v1471 = vmul.f32 %v1327, %v1446
          %v1472 = vmul.f32 %v1329, %v1450
          %v1473 = vmul.f32 %v1333, %v1446
          %v1474 = vmul.f32 %v1335, %v1450
          %v1475 = vmul.f32 %v1337, %v1446
          %v1476 = vmul.f32 %v1339, %v1450
          %v1477 = vmul.f32 %v1343, %v1446
          %v1478 = vmul.f32 %v1345, %v1450
          %v1479 = vmul.f32 %v1347, %v1446
          %v1480 = vmul.f32 %v1349, %v1450
          %v1481 = vmul.f32 %v1353, %v1446
          %v1482 = vmul.f32 %v1355, %v1450
          %v1483 = vmul.f32 %v1357, %v1446
          %v1484 = vmul.f32 %v1359, %v1450
          %v1485 = vmul.f32 %v1363, %v1446
          %v1486 = vmul.f32 %v1365, %v1450
          %v1487 = vmul.f32 %v1367, %v1446
          %v1488 = vmul.f32 %v1369, %v1450
          %v1489 = vmul.f32 %v1373, %v1446
          %v1490 = vmul.f32 %v1375, %v1450
          %v1491 = vmul.f32 %v1377, %v1446
          %v1492 = vmul.f32 %v1379, %v1450
          %v1493 = vmul.f32 %v1383, %v1446
          %v1494 = vmul.f32 %v1385, %v1450
          %v1495 = vmul.f32 %v1387, %v1446
          %v1496 = vmul.f32 %v1389, %v1450
          %v1497 = vmul.f32 %v1393, %v1446
          %v1498 = vmul.f32 %v1395, %v1450
          %v1499 = vmul.f32 %v1397, %v1446
          %v1500 = vmul.f32 %v1399, %v1450
          %v1501 = vmul.f32 %v1403, %v1446
          %v1502 = vmul.f32 %v1405, %v1450
          %v1503 = vmul.f32 %v1407, %v1446
          %v1504 = vmul.f32 %v1409, %v1450
          %v1505 = vmul.f32 %v1413, %v1446
          %v1506 = vmul.f32 %v1415, %v1450
          %v1507 = vmul.f32 %v1417, %v1446
          %v1508 = vmul.f32 %v1419, %v1450
          %v1509 = vmul.f32 %v1423, %v1446
          %v1510 = vmul.f32 %v1425, %v1450
          %v1511 = vmul.f32 %v1427, %v1446
          %v1512 = vmul.f32 %v1429, %v1450
          %v1513 = vmul.f32 %v1433, %v1446
          %v1514 = vmul.f32 %v1435, %v1450
          %v1515 = vmul.f32 %v1437, %v1446
          %v1516 = vmul.f32 %v1439, %v1450
          %v1517 = vld [vmem:[%s7] sm:$0x3]
          %v1519 = vlaneseq
          %v1520 = vshrl.u32 %v1519, 7
          %v1521 = vsub.s32 0, %v1520
          %v1522 = vrot.slane %v1517, %v1521
          %v1523 = vlaneseq
          %v1524 = vshrl.u32 %v1523, 7
          %v1525 = vsub.s32 1, %v1524
          %v1526 = vrot.slane %v1517, %v1525
          %v1529 = vadd.f32 %v1453, %v1522
          %v1530 = vadd.f32 %v1454, %v1526
          %v1531 = vadd.f32 %v1455, %v1522
          %v1532 = vadd.f32 %v1456, %v1526
          %v1533 = vadd.f32 %v1457, %v1522
          %v1534 = vadd.f32 %v1458, %v1526
          %v1535 = vadd.f32 %v1459, %v1522
          %v1536 = vadd.f32 %v1460, %v1526
          %v1537 = vadd.f32 %v1461, %v1522
          %v1538 = vadd.f32 %v1462, %v1526
          %v1539 = vadd.f32 %v1463, %v1522
          %v1540 = vadd.f32 %v1464, %v1526
          %v1541 = vadd.f32 %v1465, %v1522
          %v1542 = vadd.f32 %v1466, %v1526
          %v1543 = vadd.f32 %v1467, %v1522
          %v1544 = vadd.f32 %v1468, %v1526
          %v1545 = vadd.f32 %v1469, %v1522
          %v1546 = vadd.f32 %v1470, %v1526
          %v1547 = vadd.f32 %v1471, %v1522
          %v1548 = vadd.f32 %v1472, %v1526
          %v1549 = vadd.f32 %v1473, %v1522
          %v1550 = vadd.f32 %v1474, %v1526
          %v1551 = vadd.f32 %v1475, %v1522
          %v1552 = vadd.f32 %v1476, %v1526
          %v1553 = vadd.f32 %v1477, %v1522
          %v1554 = vadd.f32 %v1478, %v1526
          %v1555 = vadd.f32 %v1479, %v1522
          %v1556 = vadd.f32 %v1480, %v1526
          %v1557 = vadd.f32 %v1481, %v1522
          %v1558 = vadd.f32 %v1482, %v1526
          %v1559 = vadd.f32 %v1483, %v1522
          %v1560 = vadd.f32 %v1484, %v1526
          %v1561 = vadd.f32 %v1485, %v1522
          %v1562 = vadd.f32 %v1486, %v1526
          %v1563 = vadd.f32 %v1487, %v1522
          %v1564 = vadd.f32 %v1488, %v1526
          %v1565 = vadd.f32 %v1489, %v1522
          %v1566 = vadd.f32 %v1490, %v1526
          %v1567 = vadd.f32 %v1491, %v1522
          %v1568 = vadd.f32 %v1492, %v1526
          %v1569 = vadd.f32 %v1493, %v1522
          %v1570 = vadd.f32 %v1494, %v1526
          %v1571 = vadd.f32 %v1495, %v1522
          %v1572 = vadd.f32 %v1496, %v1526
          %v1573 = vadd.f32 %v1497, %v1522
          %v1574 = vadd.f32 %v1498, %v1526
          %v1575 = vadd.f32 %v1499, %v1522
          %v1576 = vadd.f32 %v1500, %v1526
          %v1577 = vadd.f32 %v1501, %v1522
          %v1578 = vadd.f32 %v1502, %v1526
          %v1579 = vadd.f32 %v1503, %v1522
          %v1580 = vadd.f32 %v1504, %v1526
          %v1581 = vadd.f32 %v1505, %v1522
          %v1582 = vadd.f32 %v1506, %v1526
          %v1583 = vadd.f32 %v1507, %v1522
          %v1584 = vadd.f32 %v1508, %v1526
          %v1585 = vadd.f32 %v1509, %v1522
          %v1586 = vadd.f32 %v1510, %v1526
          %v1587 = vadd.f32 %v1511, %v1522
          %v1588 = vadd.f32 %v1512, %v1526
          %v1589 = vadd.f32 %v1513, %v1522
          %v1590 = vadd.f32 %v1514, %v1526
          %v1591 = vadd.f32 %v1515, %v1522
          %v1592 = vadd.f32 %v1516, %v1526
          %v1593 = vmax.f32 %v1529, 0.0
          %v1594 = vmax.f32 %v1530, 0.0
          %v1595 = vmax.f32 %v1531, 0.0
          %v1596 = vmax.f32 %v1532, 0.0
          %v1597 = vmax.f32 %v1533, 0.0
          %v1598 = vmax.f32 %v1534, 0.0
          %v1599 = vmax.f32 %v1535, 0.0
          %v1600 = vmax.f32 %v1536, 0.0
          %v1601 = vmax.f32 %v1537, 0.0
          %v1602 = vmax.f32 %v1538, 0.0
          %v1603 = vmax.f32 %v1539, 0.0
          %v1604 = vmax.f32 %v1540, 0.0
          %v1605 = vmax.f32 %v1541, 0.0
          %v1606 = vmax.f32 %v1542, 0.0
          %v1607 = vmax.f32 %v1543, 0.0
          %v1608 = vmax.f32 %v1544, 0.0
          %v1609 = vmax.f32 %v1545, 0.0
          %v1610 = vmax.f32 %v1546, 0.0
          %v1611 = vmax.f32 %v1547, 0.0
          %v1612 = vmax.f32 %v1548, 0.0
          %v1613 = vmax.f32 %v1549, 0.0
          %v1614 = vmax.f32 %v1550, 0.0
          %v1615 = vmax.f32 %v1551, 0.0
          %v1616 = vmax.f32 %v1552, 0.0
          %v1617 = vmax.f32 %v1553, 0.0
          %v1618 = vmax.f32 %v1554, 0.0
          %v1619 = vmax.f32 %v1555, 0.0
          %v1620 = vmax.f32 %v1556, 0.0
          %v1621 = vmax.f32 %v1557, 0.0
          %v1622 = vmax.f32 %v1558, 0.0
          %v1623 = vmax.f32 %v1559, 0.0
          %v1624 = vmax.f32 %v1560, 0.0
          %v1625 = vmax.f32 %v1561, 0.0
          %v1626 = vmax.f32 %v1562, 0.0
          %v1627 = vmax.f32 %v1563, 0.0
          %v1628 = vmax.f32 %v1564, 0.0
          %v1629 = vmax.f32 %v1565, 0.0
          %v1630 = vmax.f32 %v1566, 0.0
          %v1631 = vmax.f32 %v1567, 0.0
          %v1632 = vmax.f32 %v1568, 0.0
          %v1633 = vmax.f32 %v1569, 0.0
          %v1634 = vmax.f32 %v1570, 0.0
          %v1635 = vmax.f32 %v1571, 0.0
          %v1636 = vmax.f32 %v1572, 0.0
          %v1637 = vmax.f32 %v1573, 0.0
          %v1638 = vmax.f32 %v1574, 0.0
          %v1639 = vmax.f32 %v1575, 0.0
          %v1640 = vmax.f32 %v1576, 0.0
          %v1641 = vmax.f32 %v1577, 0.0
          %v1642 = vmax.f32 %v1578, 0.0
          %v1643 = vmax.f32 %v1579, 0.0
          %v1644 = vmax.f32 %v1580, 0.0
          %v1645 = vmax.f32 %v1581, 0.0
          %v1646 = vmax.f32 %v1582, 0.0
          %v1647 = vmax.f32 %v1583, 0.0
          %v1648 = vmax.f32 %v1584, 0.0
          %v1649 = vmax.f32 %v1585, 0.0
          %v1650 = vmax.f32 %v1586, 0.0
          %v1651 = vmax.f32 %v1587, 0.0
          %v1652 = vmax.f32 %v1588, 0.0
          %v1653 = vmax.f32 %v1589, 0.0
          %v1654 = vmax.f32 %v1590, 0.0
          %v1655 = vmax.f32 %v1591, 0.0
          %v1656 = vmax.f32 %v1592, 0.0
          %v1657 = vpack.c.bf16 %v1595, %v1593
          %v1658 = vpack.c.bf16 %v1596, %v1594
          %v1659 = vpack.c.bf16 %v1599, %v1597
          %v1660 = vpack.c.bf16 %v1600, %v1598
          %v1661 = vpack.c.bf16 %v1603, %v1601
          %v1662 = vpack.c.bf16 %v1604, %v1602
          %v1663 = vpack.c.bf16 %v1607, %v1605
          %v1664 = vpack.c.bf16 %v1608, %v1606
          %v1665 = vpack.c.bf16 %v1611, %v1609
          %v1666 = vpack.c.bf16 %v1612, %v1610
          %v1667 = vpack.c.bf16 %v1615, %v1613
          %v1668 = vpack.c.bf16 %v1616, %v1614
          %v1669 = vpack.c.bf16 %v1619, %v1617
          %v1670 = vpack.c.bf16 %v1620, %v1618
          %v1671 = vpack.c.bf16 %v1623, %v1621
          %v1672 = vpack.c.bf16 %v1624, %v1622
          %v1673 = vpack.c.bf16 %v1627, %v1625
          %v1674 = vpack.c.bf16 %v1628, %v1626
          %v1675 = vpack.c.bf16 %v1631, %v1629
          %v1676 = vpack.c.bf16 %v1632, %v1630
          %v1677 = vpack.c.bf16 %v1635, %v1633
          %v1678 = vpack.c.bf16 %v1636, %v1634
          %v1679 = vpack.c.bf16 %v1639, %v1637
          %v1680 = vpack.c.bf16 %v1640, %v1638
          %v1681 = vpack.c.bf16 %v1643, %v1641
          %v1682 = vpack.c.bf16 %v1644, %v1642
          %v1683 = vpack.c.bf16 %v1647, %v1645
          %v1684 = vpack.c.bf16 %v1648, %v1646
          %v1685 = vpack.c.bf16 %v1651, %v1649
          %v1686 = vpack.c.bf16 %v1652, %v1650
          %v1687 = vpack.c.bf16 %v1655, %v1653
          %v1688 = vpack.c.bf16 %v1656, %v1654
          %v1689 = vld [vmem:[#allocation13] sm:$0xf]
          %v1690 = vld [vmem:[#allocation13 + $0x4] sm:$0xf]
          %v1691 = vld [vmem:[#allocation13 + $0x8] sm:$0xf]
          %v1692 = vld [vmem:[#allocation13 + $0xc] sm:$0xf]
          %v1693 = vld [vmem:[#allocation13 + $0x10] sm:$0xf]
          %v1694 = vld [vmem:[#allocation13 + $0x14] sm:$0xf]
          %v1695 = vld [vmem:[#allocation13 + $0x18] sm:$0xf]
          %v1696 = vld [vmem:[#allocation13 + $0x1c] sm:$0xf]
          %v1697 = vld [vmem:[#allocation13 + $0x20] sm:$0xf]
          %v1698 = vld [vmem:[#allocation13 + $0x24] sm:$0xf]
          %v1699 = vld [vmem:[#allocation13 + $0x28] sm:$0xf]
          %v1700 = vld [vmem:[#allocation13 + $0x2c] sm:$0xf]
          %v1701 = vld [vmem:[#allocation13 + $0x30] sm:$0xf]
          %v1702 = vld [vmem:[#allocation13 + $0x34] sm:$0xf]
          %v1703 = vld [vmem:[#allocation13 + $0x38] sm:$0xf]
          %v1704 = vld [vmem:[#allocation13 + $0x3c] sm:$0xf]
          %v1705 = vld [vmem:[#allocation13 + $0x40] sm:$0xf]
          %v1706 = vld [vmem:[#allocation13 + $0x44] sm:$0xf]
          %v1707 = vld [vmem:[#allocation13 + $0x48] sm:$0xf]
          %v1708 = vld [vmem:[#allocation13 + $0x4c] sm:$0xf]
          %v1709 = vld [vmem:[#allocation13 + $0x50] sm:$0xf]
          %v1710 = vld [vmem:[#allocation13 + $0x54] sm:$0xf]
          %v1711 = vld [vmem:[#allocation13 + $0x58] sm:$0xf]
          %v1712 = vld [vmem:[#allocation13 + $0x5c] sm:$0xf]
          %v1713 = vld [vmem:[#allocation13 + $0x60] sm:$0xf]
          %v1714 = vld [vmem:[#allocation13 + $0x64] sm:$0xf]
          %v1715 = vld [vmem:[#allocation13 + $0x68] sm:$0xf]
          %v1716 = vld [vmem:[#allocation13 + $0x6c] sm:$0xf]
          %v1717 = vld [vmem:[#allocation13 + $0x70] sm:$0xf]
          %v1718 = vld [vmem:[#allocation13 + $0x74] sm:$0xf]
          %v1719 = vld [vmem:[#allocation13 + $0x78] sm:$0xf]
          %v1720 = vld [vmem:[#allocation13 + $0x7c] sm:$0xf]
          %v1753 = vunpack.c.l.b16 %v1689
          %v1754 = vunpack.c.l.b16 %v1690
          %v1755 = vunpack.c.l.b16 %v1691
          %v1756 = vunpack.c.l.b16 %v1692
          %v1757 = vunpack.c.l.b16 %v1693
          %v1758 = vunpack.c.l.b16 %v1694
          %v1759 = vunpack.c.l.b16 %v1695
          %v1760 = vunpack.c.l.b16 %v1696
          %v1761 = vunpack.c.l.b16 %v1697
          %v1762 = vunpack.c.l.b16 %v1698
          %v1763 = vunpack.c.l.b16 %v1699
          %v1764 = vunpack.c.l.b16 %v1700
          %v1765 = vunpack.c.l.b16 %v1701
          %v1766 = vunpack.c.l.b16 %v1702
          %v1767 = vunpack.c.l.b16 %v1703
          %v1768 = vunpack.c.l.b16 %v1704
          %v1769 = vunpack.c.l.b16 %v1705
          %v1770 = vunpack.c.l.b16 %v1706
          %v1771 = vunpack.c.l.b16 %v1707
          %v1772 = vunpack.c.l.b16 %v1708
          %v1773 = vunpack.c.l.b16 %v1709
          %v1774 = vunpack.c.l.b16 %v1710
          %v1775 = vunpack.c.l.b16 %v1711
          %v1776 = vunpack.c.l.b16 %v1712
          %v1777 = vunpack.c.l.b16 %v1713
          %v1778 = vunpack.c.l.b16 %v1714
          %v1779 = vunpack.c.l.b16 %v1715
          %v1780 = vunpack.c.l.b16 %v1716
          %v1781 = vunpack.c.l.b16 %v1717
          %v1782 = vunpack.c.l.b16 %v1718
          %v1783 = vunpack.c.l.b16 %v1719
          %v1784 = vunpack.c.l.b16 %v1720
          %v1785 = vpack.c.b16 %v1754, %v1753
          %v1786 = vpack.c.b16 %v1756, %v1755
          %v1787 = vpack.c.b16 %v1758, %v1757
          %v1788 = vpack.c.b16 %v1760, %v1759
          %v1789 = vpack.c.b16 %v1762, %v1761
          %v1790 = vpack.c.b16 %v1764, %v1763
          %v1791 = vpack.c.b16 %v1766, %v1765
          %v1792 = vpack.c.b16 %v1768, %v1767
          %v1793 = vpack.c.b16 %v1770, %v1769
          %v1794 = vpack.c.b16 %v1772, %v1771
          %v1795 = vpack.c.b16 %v1774, %v1773
          %v1796 = vpack.c.b16 %v1776, %v1775
          %v1797 = vpack.c.b16 %v1778, %v1777
          %v1798 = vpack.c.b16 %v1780, %v1779
          %v1799 = vpack.c.b16 %v1782, %v1781
          %v1800 = vpack.c.b16 %v1784, %v1783
          %1817 = vmatprep.subr.bf16.mxu0 0
          %1818 = vmatpush1.bf16.msra.mxu0 %v1785
          %1819 = vmatprep.subr.bf16.mxu0 0
          %1820 = vmatpush1.bf16.msra.mxu0 %v1786
          %1821 = vmatprep.subr.bf16.mxu0 0
          %1822 = vmatpush1.bf16.msra.mxu0 %v1787
          %1823 = vmatprep.subr.bf16.mxu0 0
          %1824 = vmatpush1.bf16.msra.mxu0 %v1788
          %1825 = vmatprep.subr.bf16.mxu0 0
          %1826 = vmatpush1.bf16.msra.mxu0 %v1789
          %1827 = vmatprep.subr.bf16.mxu0 0
          %1828 = vmatpush1.bf16.msra.mxu0 %v1790
          %1829 = vmatprep.subr.bf16.mxu0 0
          %1830 = vmatpush1.bf16.msra.mxu0 %v1791
          %1831 = vmatprep.subr.bf16.mxu0 0
          %1832 = vmatpush1.bf16.msra.mxu0 %v1792
          %1833 = vmatprep.subr.bf16.mxu0 0
          %1834 = vmatpush1.bf16.msra.mxu0 %v1793
          %1835 = vmatprep.subr.bf16.mxu0 0
          %1836 = vmatpush1.bf16.msra.mxu0 %v1794
          %1837 = vmatprep.subr.bf16.mxu0 0
          %1838 = vmatpush1.bf16.msra.mxu0 %v1795
          %1839 = vmatprep.subr.bf16.mxu0 0
          %1840 = vmatpush1.bf16.msra.mxu0 %v1796
          %1841 = vmatprep.subr.bf16.mxu0 0
          %1842 = vmatpush1.bf16.msra.mxu0 %v1797
          %1843 = vmatprep.subr.bf16.mxu0 0
          %1844 = vmatpush1.bf16.msra.mxu0 %v1798
          %1845 = vmatprep.subr.bf16.mxu0 0
          %1846 = vmatpush1.bf16.msra.mxu0 %v1799
          %1847 = vmatprep.subr.bf16.mxu0 0
          %1848 = vmatpush1.bf16.msra.mxu0 %v1800
          %1849 = vmatprep.mubr.bf16.mxu0 %v1658
          %1850 = vmatmul.mubr.bf16.gmra.mrb[0].mxu0 %v1657
          %v1851 = vpop.f32.mrb[0].mxu0
          %v1852 = vadd.f32 0.0, %v1851
          %v1853 = vpop.f32.mrb[0].mxu0
          %v1854 = vpop.f32.mrb[0].mxu0
          %v1855 = vadd.f32 0.0, %v1854
          %v1856 = vpop.f32.mrb[0].mxu0
          %1857 = vmatprep.mubr.bf16.mxu0 %v1660
          %1858 = vmatmul.mubr.bf16.gmra.mrb[0].mxu0 %v1659
          %v1859 = vpop.f32.mrb[0].mxu0
          %v1860 = vadd.f32 0.0, %v1859
          %v1861 = vpop.f32.mrb[0].mxu0
          %v1862 = vpop.f32.mrb[0].mxu0
          %v1863 = vadd.f32 0.0, %v1862
          %v1864 = vpop.f32.mrb[0].mxu0
          %1865 = vmatprep.mubr.bf16.mxu0 %v1662
          %1866 = vmatmul.mubr.bf16.gmra.mrb[0].mxu0 %v1661
          %v1867 = vpop.f32.mrb[0].mxu0
          %v1868 = vadd.f32 0.0, %v1867
          %v1869 = vpop.f32.mrb[0].mxu0
          %v1870 = vpop.f32.mrb[0].mxu0
          %v1871 = vadd.f32 0.0, %v1870
          %v1872 = vpop.f32.mrb[0].mxu0
          %1873 = vmatprep.mubr.bf16.mxu0 %v1664
          %1874 = vmatmul.mubr.bf16.gmra.mrb[0].mxu0 %v1663
          %v1875 = vpop.f32.mrb[0].mxu0
          %v1876 = vadd.f32 0.0, %v1875
          %v1877 = vpop.f32.mrb[0].mxu0
          %v1878 = vpop.f32.mrb[0].mxu0
          %v1879 = vadd.f32 0.0, %v1878
          %v1880 = vpop.f32.mrb[0].mxu0
          %1881 = vmatprep.mubr.bf16.mxu0 %v1666
          %1882 = vmatmul.mubr.bf16.gmra.mrb[0].mxu0 %v1665
          %v1883 = vpop.f32.mrb[0].mxu0
          %v1884 = vadd.f32 0.0, %v1883
          %v1885 = vpop.f32.mrb[0].mxu0
          %v1886 = vpop.f32.mrb[0].mxu0
          %v1887 = vadd.f32 0.0, %v1886
          %v1888 = vpop.f32.mrb[0].mxu0
          %1889 = vmatprep.mubr.bf16.mxu0 %v1668
          %1890 = vmatmul.mubr.bf16.gmra.mrb[0].mxu0 %v1667
          %v1891 = vpop.f32.mrb[0].mxu0
          %v1892 = vadd.f32 0.0, %v1891
          %v1893 = vpop.f32.mrb[0].mxu0
          %v1894 = vpop.f32.mrb[0].mxu0
          %v1895 = vadd.f32 0.0, %v1894
          %v1896 = vpop.f32.mrb[0].mxu0
          %1897 = vmatprep.mubr.bf16.mxu0 %v1670
          %1898 = vmatmul.mubr.bf16.gmra.mrb[0].mxu0 %v1669
          %v1899 = vpop.f32.mrb[0].mxu0
          %v1900 = vadd.f32 0.0, %v1899
          %v1901 = vpop.f32.mrb[0].mxu0
          %v1902 = vpop.f32.mrb[0].mxu0
          %v1903 = vadd.f32 0.0, %v1902
          %v1904 = vpop.f32.mrb[0].mxu0
          %1905 = vmatprep.mubr.bf16.mxu0 %v1672
          %1906 = vmatmul.mubr.bf16.gmra.mrb[0].mxu0 %v1671
          %v1907 = vpop.f32.mrb[0].mxu0
          %v1908 = vadd.f32 0.0, %v1907
          %v1909 = vpop.f32.mrb[0].mxu0
          %v1910 = vpop.f32.mrb[0].mxu0
          %v1911 = vadd.f32 0.0, %v1910
          %v1912 = vpop.f32.mrb[0].mxu0
          %1913 = vmatprep.mubr.bf16.mxu0 %v1674
          %1914 = vmatmul.mubr.bf16.gmra.mrb[0].mxu0 %v1673
          %v1915 = vpop.f32.mrb[0].mxu0
          %v1916 = vadd.f32 0.0, %v1915
          %v1917 = vpop.f32.mrb[0].mxu0
          %v1918 = vpop.f32.mrb[0].mxu0
          %v1919 = vadd.f32 0.0, %v1918
          %v1920 = vpop.f32.mrb[0].mxu0
          %1921 = vmatprep.mubr.bf16.mxu0 %v1676
          %1922 = vmatmul.mubr.bf16.gmra.mrb[0].mxu0 %v1675
          %v1923 = vpop.f32.mrb[0].mxu0
          %v1924 = vadd.f32 0.0, %v1923
          %v1925 = vpop.f32.mrb[0].mxu0
          %v1926 = vpop.f32.mrb[0].mxu0
          %v1927 = vadd.f32 0.0, %v1926
          %v1928 = vpop.f32.mrb[0].mxu0
          %1929 = vmatprep.mubr.bf16.mxu0 %v1678
          %1930 = vmatmul.mubr.bf16.gmra.mrb[0].mxu0 %v1677
          %v1931 = vpop.f32.mrb[0].mxu0
          %v1932 = vadd.f32 0.0, %v1931
          %v1933 = vpop.f32.mrb[0].mxu0
          %v1934 = vpop.f32.mrb[0].mxu0
          %v1935 = vadd.f32 0.0, %v1934
          %v1936 = vpop.f32.mrb[0].mxu0
          %1937 = vmatprep.mubr.bf16.mxu0 %v1680
          %1938 = vmatmul.mubr.bf16.gmra.mrb[0].mxu0 %v1679
          %v1939 = vpop.f32.mrb[0].mxu0
          %v1940 = vadd.f32 0.0, %v1939
          %v1941 = vpop.f32.mrb[0].mxu0
          %v1942 = vpop.f32.mrb[0].mxu0
          %v1943 = vadd.f32 0.0, %v1942
          %v1944 = vpop.f32.mrb[0].mxu0
          %1945 = vmatprep.mubr.bf16.mxu0 %v1682
          %1946 = vmatmul.mubr.bf16.gmra.mrb[0].mxu0 %v1681
          %v1947 = vpop.f32.mrb[0].mxu0
          %v1948 = vadd.f32 0.0, %v1947
          %v1949 = vpop.f32.mrb[0].mxu0
          %v1950 = vpop.f32.mrb[0].mxu0
          %v1951 = vadd.f32 0.0, %v1950
          %v1952 = vpop.f32.mrb[0].mxu0
          %1953 = vmatprep.mubr.bf16.mxu0 %v1684
          %1954 = vmatmul.mubr.bf16.gmra.mrb[0].mxu0 %v1683
          %v1955 = vpop.f32.mrb[0].mxu0
          %v1956 = vadd.f32 0.0, %v1955
          %v1957 = vpop.f32.mrb[0].mxu0
          %v1958 = vpop.f32.mrb[0].mxu0
          %v1959 = vadd.f32 0.0, %v1958
          %v1960 = vpop.f32.mrb[0].mxu0
          %1961 = vmatprep.mubr.bf16.mxu0 %v1686
          %1962 = vmatmul.mubr.bf16.gmra.mrb[0].mxu0 %v1685
          %v1963 = vpop.f32.mrb[0].mxu0
          %v1964 = vadd.f32 0.0, %v1963
          %v1965 = vpop.f32.mrb[0].mxu0
          %v1966 = vpop.f32.mrb[0].mxu0
          %v1967 = vadd.f32 0.0, %v1966
          %v1968 = vpop.f32.mrb[0].mxu0
          %1969 = vmatprep.mubr.bf16.mxu0 %v1688
          %1970 = vmatmul.mubr.bf16.gmra.mrb[0].mxu0 %v1687
          %v1971 = vpop.f32.mrb[0].mxu0
          %v1972 = vadd.f32 0.0, %v1971
          %v1973 = vpop.f32.mrb[0].mxu0
          %v1974 = vpop.f32.mrb[0].mxu0
          %v1975 = vadd.f32 0.0, %v1974
          %v1976 = vpop.f32.mrb[0].mxu0
          %1977 = vdwg.mxu0
          %v1978 = vld [vmem:[%s9] sm:$0x1]
          %v1980 = vlaneseq
          %v1981 = vshrl.u32 %v1980, 7
          %v1982 = vsub.s32 0, %v1981
          %v1983 = vrot.slane %v1978, %v1982
          %v1985 = vmul.f32 %v1852, %v1983
          %v1986 = vmul.f32 %v1855, %v1983
          %v1987 = vmul.f32 %v1860, %v1983
          %v1988 = vmul.f32 %v1863, %v1983
          %v1989 = vmul.f32 %v1868, %v1983
          %v1990 = vmul.f32 %v1871, %v1983
          %v1991 = vmul.f32 %v1876, %v1983
          %v1992 = vmul.f32 %v1879, %v1983
          %v1993 = vmul.f32 %v1884, %v1983
          %v1994 = vmul.f32 %v1887, %v1983
          %v1995 = vmul.f32 %v1892, %v1983
          %v1996 = vmul.f32 %v1895, %v1983
          %v1997 = vmul.f32 %v1900, %v1983
          %v1998 = vmul.f32 %v1903, %v1983
          %v1999 = vmul.f32 %v1908, %v1983
          %v2000 = vmul.f32 %v1911, %v1983
          %v2001 = vmul.f32 %v1916, %v1983
          %v2002 = vmul.f32 %v1919, %v1983
          %v2003 = vmul.f32 %v1924, %v1983
          %v2004 = vmul.f32 %v1927, %v1983
          %v2005 = vmul.f32 %v1932, %v1983
          %v2006 = vmul.f32 %v1935, %v1983
          %v2007 = vmul.f32 %v1940, %v1983
          %v2008 = vmul.f32 %v1943, %v1983
          %v2009 = vmul.f32 %v1948, %v1983
          %v2010 = vmul.f32 %v1951, %v1983
          %v2011 = vmul.f32 %v1956, %v1983
          %v2012 = vmul.f32 %v1959, %v1983
          %v2013 = vmul.f32 %v1964, %v1983
          %v2014 = vmul.f32 %v1967, %v1983
          %v2015 = vmul.f32 %v1972, %v1983
          %v2016 = vmul.f32 %v1975, %v1983
          %v2017 = vld [vmem:[%s10] sm:$0x1]
          %v2019 = vlaneseq
          %v2020 = vshrl.u32 %v2019, 7
          %v2021 = vsub.s32 0, %v2020
          %v2022 = vrot.slane %v2017, %v2021
          %v2024 = vadd.f32 %v1985, %v2022
          %v2025 = vadd.f32 %v1986, %v2022
          %v2026 = vadd.f32 %v1987, %v2022
          %v2027 = vadd.f32 %v1988, %v2022
          %v2028 = vadd.f32 %v1989, %v2022
          %v2029 = vadd.f32 %v1990, %v2022
          %v2030 = vadd.f32 %v1991, %v2022
          %v2031 = vadd.f32 %v1992, %v2022
          %v2032 = vadd.f32 %v1993, %v2022
          %v2033 = vadd.f32 %v1994, %v2022
          %v2034 = vadd.f32 %v1995, %v2022
          %v2035 = vadd.f32 %v1996, %v2022
          %v2036 = vadd.f32 %v1997, %v2022
          %v2037 = vadd.f32 %v1998, %v2022
          %v2038 = vadd.f32 %v1999, %v2022
          %v2039 = vadd.f32 %v2000, %v2022
          %v2040 = vadd.f32 %v2001, %v2022
          %v2041 = vadd.f32 %v2002, %v2022
          %v2042 = vadd.f32 %v2003, %v2022
          %v2043 = vadd.f32 %v2004, %v2022
          %v2044 = vadd.f32 %v2005, %v2022
          %v2045 = vadd.f32 %v2006, %v2022
          %v2046 = vadd.f32 %v2007, %v2022
          %v2047 = vadd.f32 %v2008, %v2022
          %v2048 = vadd.f32 %v2009, %v2022
          %v2049 = vadd.f32 %v2010, %v2022
          %v2050 = vadd.f32 %v2011, %v2022
          %v2051 = vadd.f32 %v2012, %v2022
          %v2052 = vadd.f32 %v2013, %v2022
          %v2053 = vadd.f32 %v2014, %v2022
          %v2054 = vadd.f32 %v2015, %v2022
          %v2055 = vadd.f32 %v2016, %v2022
          %v2056 = vmax.f32 %v2024, 0.0
          %v2057 = vmax.f32 %v2025, 0.0
          %v2058 = vmax.f32 %v2026, 0.0
          %v2059 = vmax.f32 %v2027, 0.0
          %v2060 = vmax.f32 %v2028, 0.0
          %v2061 = vmax.f32 %v2029, 0.0
          %v2062 = vmax.f32 %v2030, 0.0
          %v2063 = vmax.f32 %v2031, 0.0
          %v2064 = vmax.f32 %v2032, 0.0
          %v2065 = vmax.f32 %v2033, 0.0
          %v2066 = vmax.f32 %v2034, 0.0
          %v2067 = vmax.f32 %v2035, 0.0
          %v2068 = vmax.f32 %v2036, 0.0
          %v2069 = vmax.f32 %v2037, 0.0
          %v2070 = vmax.f32 %v2038, 0.0
          %v2071 = vmax.f32 %v2039, 0.0
          %v2072 = vmax.f32 %v2040, 0.0
          %v2073 = vmax.f32 %v2041, 0.0
          %v2074 = vmax.f32 %v2042, 0.0
          %v2075 = vmax.f32 %v2043, 0.0
          %v2076 = vmax.f32 %v2044, 0.0
          %v2077 = vmax.f32 %v2045, 0.0
          %v2078 = vmax.f32 %v2046, 0.0
          %v2079 = vmax.f32 %v2047, 0.0
          %v2080 = vmax.f32 %v2048, 0.0
          %v2081 = vmax.f32 %v2049, 0.0
          %v2082 = vmax.f32 %v2050, 0.0
          %v2083 = vmax.f32 %v2051, 0.0
          %v2084 = vmax.f32 %v2052, 0.0
          %v2085 = vmax.f32 %v2053, 0.0
          %v2086 = vmax.f32 %v2054, 0.0
          %v2087 = vmax.f32 %v2055, 0.0
          %2088 = vst [vmem:[%s517] sm:$0xff] %v2056
          %2089 = vst [vmem:[%s517 + $0x8] sm:$0xff] %v2057
          %2090 = vst [vmem:[%s517 + $0x10] sm:$0xff] %v2058
          %2091 = vst [vmem:[%s517 + $0x18] sm:$0xff] %v2059
          %2092 = vst [vmem:[%s517 + $0x20] sm:$0xff] %v2060
          %2093 = vst [vmem:[%s517 + $0x28] sm:$0xff] %v2061
          %2094 = vst [vmem:[%s517 + $0x30] sm:$0xff] %v2062
          %2095 = vst [vmem:[%s517 + $0x38] sm:$0xff] %v2063
          %2096 = vst [vmem:[%s517 + $0x40] sm:$0xff] %v2064
          %2097 = vst [vmem:[%s517 + $0x48] sm:$0xff] %v2065
          %2098 = vst [vmem:[%s517 + $0x50] sm:$0xff] %v2066
          %2099 = vst [vmem:[%s517 + $0x58] sm:$0xff] %v2067
          %2100 = vst [vmem:[%s517 + $0x60] sm:$0xff] %v2068
          %2101 = vst [vmem:[%s517 + $0x68] sm:$0xff] %v2069
          %2102 = vst [vmem:[%s517 + $0x70] sm:$0xff] %v2070
          %2103 = vst [vmem:[%s517 + $0x78] sm:$0xff] %v2071
          %2104 = vst [vmem:[%s517 + $0x80] sm:$0xff] %v2072
          %2105 = vst [vmem:[%s517 + $0x88] sm:$0xff] %v2073
          %2106 = vst [vmem:[%s517 + $0x90] sm:$0xff] %v2074
          %2107 = vst [vmem:[%s517 + $0x98] sm:$0xff] %v2075
          %2108 = vst [vmem:[%s517 + $0xa0] sm:$0xff] %v2076
          %2109 = vst [vmem:[%s517 + $0xa8] sm:$0xff] %v2077
          %2110 = vst [vmem:[%s517 + $0xb0] sm:$0xff] %v2078
          %2111 = vst [vmem:[%s517 + $0xb8] sm:$0xff] %v2079
          %2112 = vst [vmem:[%s517 + $0xc0] sm:$0xff] %v2080
          %2113 = vst [vmem:[%s517 + $0xc8] sm:$0xff] %v2081
          %2114 = vst [vmem:[%s517 + $0xd0] sm:$0xff] %v2082
          %2115 = vst [vmem:[%s517 + $0xd8] sm:$0xff] %v2083
          %2116 = vst [vmem:[%s517 + $0xe0] sm:$0xff] %v2084
          %2117 = vst [vmem:[%s517 + $0xe8] sm:$0xff] %v2085
          %2118 = vst [vmem:[%s517 + $0xf0] sm:$0xff] %v2086
          %2119 = vst [vmem:[%s517 + $0xf8] sm:$0xff] %v2087
        $region88: #{tpu_custom_call.1} parent=59 // pred_fallthru
          _
        %s2120 = sand.u32 %s291, 1
        %s2121 = scalar_lea.sflag [#allocation7], %s2120
        %s2122 = sand.u32 %s291, 1
        %s2123 = smul.addr %s2122, 256
        %s2124 = scalar_lea.vmem [#allocation14], %s2123
        // Predicated region
        $region89: #{tpu_custom_call.1} parent=59 // pred_check
          %p2125 = pneg %p301
        $region90: #{tpu_custom_call.1} parent=59 // pred_check_branch
          %2127 = sbr.rel (%p2125) target = $region92
        $region91: #{tpu_custom_call.1} parent=59 // pred_region
          %s2128 = smul.u32 32, %s40
          %s2130 = ssub.s32 4096, 4096
          %2131 = vsyncadd %s2121, %s2130
          %s2132 = smul.addr %s2128, 128
          %s2133 = scalar_lea.hbm %s11, %s2132
          %s2134 = sshll.u32 %s2124, 4
          %s2135 = int_to_ptr.vmem [resolvable:$true] %s2134
          %2140 = dma.vmem_to_hbm [thread:$0]  %s2135, 4096, %s2133, %s2121, 128, 128, 8
        $region92: #{tpu_custom_call.1} parent=59 // pred_fallthru
          _
      $region60: #{tpu_custom_call.1} parent=5 // pred_fallthru
        _
      %p2141 = scmp.le.s32.totalorder 2, %s31
      // Predicated region
      $region93: #{tpu_custom_call.1} parent=5 // pred_check
        %p2142 = pneg %p2141
      $region94: #{tpu_custom_call.1} parent=5 // pred_check_branch
        %2144 = sbr.rel (%p2142) target = $region96
      $region95: #{tpu_custom_call.1} parent=5 // pred_region
        %s2145 = ssub.s32 %s31, 2
        // Predicated region
        $region97: #{tpu_custom_call.1} parent=95 // pred_check
          %p2146 = pneg %p307
        $region98: #{tpu_custom_call.1} parent=95 // pred_check_branch
          %2148 = sbr.rel (%p2146) target = $region100
        $region99: #{tpu_custom_call.1} parent=95 // pred_region
          %s2149 = sand.u32 %s292, 1
          %s2150 = scalar_lea.sflag [#allocation7], %s2149
          %s2151 = sand.u32 %s292, 1
          %s2152 = smul.addr %s2151, 256
          %s2153 = scalar_lea.vmem [#allocation14], %s2152
          %2154 = dma.done %s2150, 4096
        $region100: #{tpu_custom_call.1} parent=95 // pred_fallthru
          _
      $region96: #{tpu_custom_call.1} parent=5 // pred_fallthru
        _
    $region6: #{tpu_custom_call.1} parent=1 // loop_footer
      %s35 = sadd.s32 1, %s31
    $region7: #{tpu_custom_call.1} parent=1 // loop_footer_branch
      %30 = sbr.rel target = $region3
    $region8: #{tpu_custom_call.1} parent=1 // loop_exit
      _
    %2155 = vsyncpa [#allocation6], 1
    %s2156 = scalar_lea.sflag [#allocation6], 1
    %2157 = vsyncpa %s2156, 1
    %2158 = vsyncpa [#allocation9], 1
    %s2159 = scalar_lea.sflag [#allocation9], 1
    %2160 = vsyncpa %s2159, 1
    %2161 = vsyncpa [#allocation12], 1
    %2162 = vsyncpa [#allocation7], 1
    %s2163 = scalar_lea.sflag [#allocation7], 1
    %2164 = vsyncpa %s2163, 1

</llo_original>
